<compile_context>
chip_gen: v7x
topology: tpu7x:2x2x1
jax: 0.10.0
libtpu: 0.0.40
codegen_flags: <defaults>
</compile_context>

<pallas_src>
import math

import jax
import jax.numpy as jnp
from jax.experimental import pallas as pl
from jax.experimental.pallas import tpu as pltpu

# ----------------------------- config (small test shapes) -----------------------------
VOCAB = 50
PAD_LEN = 16          # padded_sentence_length (pos-enc table length)
NUM_LAYERS = 2
D_MODEL = 64
NUM_HEADS = 2
D_K = 64              # MultiHeadAttention(d_model, num_heads, 64, 64)
D_V = 64
DFF = 128
BATCH = 2
SEQ = 8
EPS = 1e-6

SQRT_D = math.sqrt(D_MODEL)
QKV_K_OFF = NUM_HEADS * D_K        # start of K block in fused QKV output
QKV_V_OFF = 2 * NUM_HEADS * D_K    # start of V block in fused QKV output


# ----------------------------- Pallas kernel: fused encoder stack -----------------------------
def _layernorm(x, gamma, beta):
    mu = jnp.mean(x, axis=-1, keepdims=True)
    var = jnp.mean((x - mu) ** 2, axis=-1, keepdims=True)
    return (x - mu) * jax.lax.rsqrt(var + EPS) * gamma + beta


def encoder_stack_kernel(x_ref, bias_ref,
                         wqkv_ref, bqkv_ref, wo_ref, bo_ref,
                         g1_ref, be1_ref, w1_ref, bf1_ref,
                         w2_ref, bf2_ref, g2_ref, be2_ref,
                         out_ref):
    l = pl.program_id(1)

    # Layer 0 of this batch element: seed the resident activation block.
    # (scale + pos-enc already applied in the wrapper)
    @pl.when(l == 0)
    def _():
        out_ref[...] = x_ref[...]

    x = out_ref[0]            # (S, D) f32 activation, resident in VMEM across layers
    bias = bias_ref[0]        # (1, S) f32 additive key-pad bias (-1e9 at padded keys)

    # Fused QKV projection: one (S, D) @ (D, 3*H*Dk) MXU matmul, bf16 operands, f32 acc.
    xb = x.astype(jnp.bfloat16)
    qkv = jnp.dot(xb, wqkv_ref[0], preferred_element_type=jnp.float32) + bqkv_ref[0]

    inv_sqrt_dk = 1.0 / math.sqrt(D_K)
    heads = []
    for h in range(NUM_HEADS):     # static, small
        q_h = qkv[:, h * D_K:(h + 1) * D_K].astype(jnp.bfloat16)
        k_h = qkv[:, QKV_K_OFF + h * D_K:QKV_K_OFF + (h + 1) * D_K].astype(jnp.bfloat16)
        v_h = qkv[:, QKV_V_OFF + h * D_V:QKV_V_OFF + (h + 1) * D_V].astype(jnp.bfloat16)

        # q @ k^T without materializing a transpose (contract both last dims).
        scores = jax.lax.dot_general(
            q_h, k_h, (((1,), (1,)), ((), ())),
            preferred_element_type=jnp.float32) * inv_sqrt_dk + bias   # f32 bias add
        scores = scores - jnp.max(scores, axis=-1, keepdims=True)
        e = jnp.exp(scores)
        p = e * pl.reciprocal(jnp.sum(e, axis=-1, keepdims=True), approx=True)

        heads.append(jnp.dot(p.astype(jnp.bfloat16), v_h,
                             preferred_element_type=jnp.float32))      # (S, Dv)

    # Lane-axis concat -> (S, H*Dv = 128); single K=128 output projection.
    heads_cat = jnp.concatenate(heads, axis=-1).astype(jnp.bfloat16)
    attn_out = jnp.dot(heads_cat, wo_ref[0],
                       preferred_element_type=jnp.float32) + bo_ref[0]

    # dropout1 -> identity (eval)
    out1 = _layernorm(x + attn_out, g1_ref[0], be1_ref[0])             # (S, D) f32

    # ---- point-wise feed-forward (bf16 operands, f32 accumulation) ----
    h1 = jnp.dot(out1.astype(jnp.bfloat16), w1_ref[0],
                 preferred_element_type=jnp.float32) + bf1_ref[0]
    h1 = jnp.maximum(h1, 0.0)
    ffn = jnp.dot(h1.astype(jnp.bfloat16), w2_ref[0],
                  preferred_element_type=jnp.float32) + bf2_ref[0]

    # dropout2 -> identity (eval)
    out_ref[0] = _layernorm(out1 + ffn, g2_ref[0], be2_ref[0]).astype(out_ref.dtype)


def encoder_stack_pallas(x, attn_bias, sp):
    """x: (B, S, D) f32 (already scaled + pos-encoded); attn_bias: (B, 1, S) f32;
    sp: stacked (leading-L) params, matmul weights already bf16."""
    B, S, D = x.shape
    L = sp["wqkv"].shape[0]
    names = ["wqkv", "bqkv", "wo", "bo", "g1", "be1",
             "w1", "bf1", "w2", "bf2", "g2", "be2"]
    weights = [sp[n] for n in names]

    in_specs = [
        pl.BlockSpec((1, S, D), lambda b, l: (b, 0, 0)),     # x (DMA'd once per batch elem)
        pl.BlockSpec((1, 1, S), lambda b, l: (b, 0, 0)),     # key-pad bias
    ]
    for w in weights:  # per-layer weight slabs, pipelined over the layer axis
        in_specs.append(pl.BlockSpec((1,) + w.shape[1:], lambda b, l: (l, 0, 0)))

    return pl.pallas_call(
        encoder_stack_kernel,
        out_shape=jax.ShapeDtypeStruct((B, S, D), jnp.float32),
        grid=(B, L),
        in_specs=in_specs,
        out_specs=pl.BlockSpec((1, S, D), lambda b, l: (b, 0, 0)),  # resident across L
        compiler_params=pltpu.CompilerParams(
            dimension_semantics=("parallel", "arbitrary")),
    )(x, attn_bias, *weights)


# ----------------------------- plain-JAX glue -----------------------------
def positional_encoding(length, d_model):
    pos = jnp.arange(length, dtype=jnp.float32)[:, None]
    i = jnp.arange(d_model, dtype=jnp.float32)[None, :]
    angle_rates = 1.0 / jnp.power(10000.0, (2.0 * jnp.floor(i / 2.0)) / d_model)
    angle_rads = pos * angle_rates
    pe = jnp.where((jnp.arange(d_model) % 2) == 0,
                   jnp.sin(angle_rads), jnp.cos(angle_rads))
    return pe[None, :, :]    # (1, length, d_model)


def init_layer_params(key):
    ks = jax.random.split(key, 6)
    def w(k, shape):  # weights stored as (in, out)
        return jax.random.normal(k, shape, dtype=jnp.float32) * 0.02
    return {
        "wq": w(ks[0], (D_MODEL, NUM_HEADS * D_K)), "bq": jnp.zeros((1, NUM_HEADS * D_K), jnp.float32),
        "wk": w(ks[1], (D_MODEL, NUM_HEADS * D_K)), "bk": jnp.zeros((1, NUM_HEADS * D_K), jnp.float32),
        "wv": w(ks[2], (D_MODEL, NUM_HEADS * D_V)), "bv": jnp.zeros((1, NUM_HEADS * D_V), jnp.float32),
        "wo": w(ks[3], (NUM_HEADS * D_V, D_MODEL)), "bo": jnp.zeros((1, D_MODEL), jnp.float32),
        "g1": jnp.ones((1, D_MODEL), jnp.float32),  "be1": jnp.zeros((1, D_MODEL), jnp.float32),
        "w1": w(ks[4], (D_MODEL, DFF)),             "bf1": jnp.zeros((1, DFF), jnp.float32),
        "w2": w(ks[5], (DFF, D_MODEL)),             "bf2": jnp.zeros((1, D_MODEL), jnp.float32),
        "g2": jnp.ones((1, D_MODEL), jnp.float32),  "be2": jnp.zeros((1, D_MODEL), jnp.float32),
    }


def stack_params(layer_params):
    """Stack per-layer params with a leading L axis; fuse Wq/Wk/Wv -> Wqkv.
    MXU matmul weights are pre-cast to bf16 (f32 accumulation happens in-kernel)."""
    def st(name):
        return jnp.stack([p[name] for p in layer_params])
    wqkv = jnp.stack([jnp.concatenate([p["wq"], p["wk"], p["wv"]], axis=1)
                      for p in layer_params])                     # (L, D, 3*H*Dk)
    bqkv = jnp.stack([jnp.concatenate([p["bq"], p["bk"], p["bv"]], axis=1)
                      for p in layer_params])                     # (L, 1, 3*H*Dk)
    sp = {"wqkv": wqkv, "bqkv": bqkv, "wo": st("wo"), "bo": st("bo"),
          "g1": st("g1"), "be1": st("be1"), "w1": st("w1"), "bf1": st("bf1"),
          "w2": st("w2"), "bf2": st("bf2"), "g2": st("g2"), "be2": st("be2")}
    for n in ("wqkv", "wo", "w1", "w2"):
        sp[n] = sp[n].astype(jnp.bfloat16)
    return sp


def encoder_forward(tokens, mask, emb_table, pos_enc, stacked_params):
    B, S = tokens.shape
    # Embedding gather + sqrt(d_model) scale + pos-enc add in plain JAX (cheap,
    # fused elementwise); dropout -> identity (eval).
    x = emb_table[tokens] * SQRT_D + pos_enc[:, :S, :]            # (B, S, D)
    # Per-batch additive key-pad bias: -1e9 where the key is a padded token.
    key_pad_bias = (mask * (-1e9)).astype(jnp.float32)            # (B, 1, S)
    return encoder_stack_pallas(x.astype(jnp.float32), key_pad_bias, stacked_params)


# ----------------------------- pure-JAX reference (for sanity check) -----------------------------
def _ref_layer(x, mask, p):
    def ln(v, g, b):
        mu = jnp.mean(v, -1, keepdims=True)
        var = jnp.mean((v - mu) ** 2, -1, keepdims=True)
        return (v - mu) / jnp.sqrt(var + EPS) * g + b
    q = x @ p["wq"] + p["bq"]; k = x @ p["wk"] + p["bk"]; v = x @ p["wv"] + p["bv"]
    B, S, _ = x.shape
    q = q.reshape(B, S, NUM_HEADS, D_K).transpose(0, 2, 1, 3)
    k = k.reshape(B, S, NUM_HEADS, D_K).transpose(0, 2, 1, 3)
    v = v.reshape(B, S, NUM_HEADS, D_V).transpose(0, 2, 1, 3)
    sc = jnp.einsum("bhqd,bhkd->bhqk", q, k) / math.sqrt(D_K)
    sc = sc + mask[:, :, None, :] * (-1e9)
    a = jax.nn.softmax(sc, axis=-1)
    o = jnp.einsum("bhqk,bhkd->bhqd", a, v).transpose(0, 2, 1, 3).reshape(B, S, NUM_HEADS * D_V)
    attn_out = o @ p["wo"] + p["bo"]
    out1 = ln(x + attn_out, p["g1"], p["be1"])
    ffn = jnp.maximum(out1 @ p["w1"] + p["bf1"], 0.0) @ p["w2"] + p["bf2"]
    return ln(out1 + ffn, p["g2"], p["be2"])


def _ref_forward(tokens, mask, emb_table, pos_enc, layer_params):
    x = emb_table[tokens] * jnp.sqrt(jnp.float32(D_MODEL)) + pos_enc[:, :tokens.shape[-1], :]
    for p in layer_params:
        x = _ref_layer(x, mask, p)
    return x


# ----------------------------- main -----------------------------
if __name__ == "__main__":
    key = jax.random.PRNGKey(0)
    k_tok, k_emb, *k_layers = jax.random.split(key, 2 + NUM_LAYERS)

    tokens = jax.random.randint(k_tok, (BATCH, SEQ), 0, VOCAB)
    tokens = tokens.at[:, -2:].set(0)                       # some padding tokens
    mask = (tokens == 0).astype(jnp.float32)[:, None, :]    # (B, 1, S), 1.0 = padded

    emb_table = jax.random.normal(k_emb, (VOCAB, D_MODEL), dtype=jnp.float32) * 0.02
    pos_enc = positional_encoding(PAD_LEN, D_MODEL)
    layer_params = [init_layer_params(k) for k in k_layers]
    stacked_params = stack_params(layer_params)

    out = encoder_forward(tokens, mask, emb_table, pos_enc, stacked_params)
    out = jax.block_until_ready(out)

    ref = _ref_forward(tokens, mask, emb_table, pos_enc, layer_params)
    assert out.shape == (BATCH, SEQ, D_MODEL)
    # bf16 MXU operands + approx reciprocal -> looser tolerance vs f32 reference.
    assert jnp.allclose(out, ref, atol=2e-2, rtol=2e-2), "mismatch vs JAX reference"

    print("KERNEL_OK")
</pallas_src>

<mosaic_0001>
module attributes {stable_mosaic.version = 11 : i64} {
  func.func @encoder_stack_kernel(%arg0: i32, %arg1: i32, %arg2: memref<1x8x64xf32, #tpu.memory_space<vmem>>, %arg3: memref<1x1x8xf32, #tpu.memory_space<vmem>>, %arg4: memref<1x64x384xbf16, #tpu.memory_space<vmem>>, %arg5: memref<1x1x384xf32, #tpu.memory_space<vmem>>, %arg6: memref<1x128x64xbf16, #tpu.memory_space<vmem>>, %arg7: memref<1x1x64xf32, #tpu.memory_space<vmem>>, %arg8: memref<1x1x64xf32, #tpu.memory_space<vmem>>, %arg9: memref<1x1x64xf32, #tpu.memory_space<vmem>>, %arg10: memref<1x64x128xbf16, #tpu.memory_space<vmem>>, %arg11: memref<1x1x128xf32, #tpu.memory_space<vmem>>, %arg12: memref<1x128x64xbf16, #tpu.memory_space<vmem>>, %arg13: memref<1x1x64xf32, #tpu.memory_space<vmem>>, %arg14: memref<1x1x64xf32, #tpu.memory_space<vmem>>, %arg15: memref<1x1x64xf32, #tpu.memory_space<vmem>>, %arg16: memref<1x8x64xf32, #tpu.memory_space<vmem>>) attributes {dimension_semantics = [#tpu.dimension_semantics<parallel>, #tpu.dimension_semantics<arbitrary>], iteration_bounds = array<i64: 2, 2>, scalar_prefetch = 0 : i64, scratch_operands = 0 : i64, tpu.core_type = #tpu.core_type<tc>, window_params = [{transform_indices = @transform_0, window_bounds = array<i64: 1, 8, 64>}, {transform_indices = @transform_1, window_bounds = array<i64: 1, 1, 8>}, {transform_indices = @transform_2, window_bounds = array<i64: 1, 64, 384>}, {transform_indices = @transform_3, window_bounds = array<i64: 1, 1, 384>}, {transform_indices = @transform_4, window_bounds = array<i64: 1, 128, 64>}, {transform_indices = @transform_5, window_bounds = array<i64: 1, 1, 64>}, {transform_indices = @transform_6, window_bounds = array<i64: 1, 1, 64>}, {transform_indices = @transform_7, window_bounds = array<i64: 1, 1, 64>}, {transform_indices = @transform_8, window_bounds = array<i64: 1, 64, 128>}, {transform_indices = @transform_9, window_bounds = array<i64: 1, 1, 128>}, {transform_indices = @transform_10, window_bounds = array<i64: 1, 128, 64>}, {transform_indices = @transform_11, window_bounds = array<i64: 1, 1, 64>}, {transform_indices = @transform_12, window_bounds = array<i64: 1, 1, 64>}, {transform_indices = @transform_13, window_bounds = array<i64: 1, 1, 64>}, {transform_indices = @transform_14, window_bounds = array<i64: 1, 8, 64>}]} {
    %c0_i32 = arith.constant 0 : i32
    %0 = arith.cmpi eq, %arg1, %c0_i32 : i32
    %1 = arith.extui %0 : i1 to i32
    %c0_i32_0 = arith.constant 0 : i32
    %2 = arith.cmpi ne, %1, %c0_i32_0 : i32
    scf.if %2 {
      %c0_69 = arith.constant 0 : index
      %c0_70 = arith.constant 0 : index
      %c0_71 = arith.constant 0 : index
      %145 = vector.load %arg2[%c0_69, %c0_70, %c0_71] : memref<1x8x64xf32, #tpu.memory_space<vmem>>, vector<1x8x64xf32>
      %c0_72 = arith.constant 0 : index
      %c0_73 = arith.constant 0 : index
      %c0_74 = arith.constant 0 : index
      %146 = vector.load %arg16[%c0_72, %c0_73, %c0_74] : memref<1x8x64xf32, #tpu.memory_space<vmem>>, vector<1x8x64xf32>
      tpu.vector_store %arg16[%c0_72, %c0_73, %c0_74], %145 {strides = array<i32>} : memref<1x8x64xf32, #tpu.memory_space<vmem>>, vector<1x8x64xf32>,
    } else {
    }
    %c0 = arith.constant 0 : index
    %c0_1 = arith.constant 0 : index
    %c0_2 = arith.constant 0 : index
    %3 = vector.load %arg16[%c0, %c0_1, %c0_2] : memref<1x8x64xf32, #tpu.memory_space<vmem>>, vector<1x8x64xf32>
    %4 = vector.shape_cast %3 : vector<1x8x64xf32> to vector<8x64xf32>
    %c0_3 = arith.constant 0 : index
    %c0_4 = arith.constant 0 : index
    %c0_5 = arith.constant 0 : index
    %5 = vector.load %arg3[%c0_3, %c0_4, %c0_5] : memref<1x1x8xf32, #tpu.memory_space<vmem>>, vector<1x1x8xf32>
    %6 = vector.shape_cast %5 : vector<1x1x8xf32> to vector<1x8xf32>
    %7 = arith.truncf %4 : vector<8x64xf32> to vector<8x64xbf16>
    %c0_6 = arith.constant 0 : index
    %c0_7 = arith.constant 0 : index
    %c0_8 = arith.constant 0 : index
    %8 = vector.load %arg4[%c0_6, %c0_7, %c0_8] : memref<1x64x384xbf16, #tpu.memory_space<vmem>>, vector<1x64x384xbf16>
    %9 = vector.shape_cast %8 : vector<1x64x384xbf16> to vector<64x384xbf16>
    %cst = arith.constant dense<0.000000e+00> : vector<8x384xf32>
    %10 = tpu.matmul %7, %9, %cst {dimension_numbers = #tpu.dot_dimension_numbers<[1], [0], [0], [1], [0, 0, 1, 1], [], []>} : vector<8x64xbf16>, vector<64x384xbf16>, vector<8x384xf32> -> vector<8x384xf32>
    %c0_9 = arith.constant 0 : index
    %c0_10 = arith.constant 0 : index
    %c0_11 = arith.constant 0 : index
    %11 = vector.load %arg5[%c0_9, %c0_10, %c0_11] : memref<1x1x384xf32, #tpu.memory_space<vmem>>, vector<1x1x384xf32>
    %12 = vector.shape_cast %11 : vector<1x1x384xf32> to vector<1x384xf32>
    %13 = vector.broadcast %12 : vector<1x384xf32> to vector<8x384xf32>
    %14 = arith.addf %10, %13 : vector<8x384xf32>
    %15 = vector.extract_strided_slice %14 {offsets = [0, 0], sizes = [8, 64], strides = [1, 1]} : vector<8x384xf32> to vector<8x64xf32>
    %16 = arith.truncf %15 : vector<8x64xf32> to vector<8x64xbf16>
    %17 = vector.extract_strided_slice %14 {offsets = [0, 128], sizes = [8, 64], strides = [1, 1]} : vector<8x384xf32> to vector<8x64xf32>
    %18 = arith.truncf %17 : vector<8x64xf32> to vector<8x64xbf16>
    %19 = vector.extract_strided_slice %14 {offsets = [0, 256], sizes = [8, 64], strides = [1, 1]} : vector<8x384xf32> to vector<8x64xf32>
    %20 = arith.truncf %19 : vector<8x64xf32> to vector<8x64xbf16>
    %cst_12 = arith.constant dense<0.000000e+00> : vector<8x8xf32>
    %21 = tpu.matmul %16, %18, %cst_12 {dimension_numbers = #tpu.dot_dimension_numbers<[1], [1], [0], [0], [0, 0, 1, 0], [], []>} : vector<8x64xbf16>, vector<8x64xbf16>, vector<8x8xf32> -> vector<8x8xf32>
    %cst_13 = arith.constant 1.250000e-01 : f32
    %22 = vector.broadcast %cst_13 : f32 to vector<8x8xf32>
    %23 = arith.mulf %21, %22 : vector<8x8xf32>
    %24 = vector.broadcast %6 : vector<1x8xf32> to vector<8x8xf32>
    %25 = arith.addf %23, %24 : vector<8x8xf32>
    %cst_14 = arith.constant dense<0xFF800000> : vector<8xf32>
    %26 = vector.multi_reduction <maximumf>, %25, %cst_14 [1] : vector<8x8xf32> to vector<8xf32>
    %27 = vector.shape_cast %26 : vector<8xf32> to vector<8x1xf32>
    %28 = vector.broadcast %27 : vector<8x1xf32> to vector<8x8xf32>
    %29 = arith.subf %25, %28 : vector<8x8xf32>
    %30 = math.exp %29 : vector<8x8xf32>
    %cst_15 = arith.constant dense<0.000000e+00> : vector<8xf32>
    %31 = vector.multi_reduction <add>, %30, %cst_15 [1] : vector<8x8xf32> to vector<8xf32>
    %32 = vector.shape_cast %31 : vector<8xf32> to vector<8x1xf32>
    %33 = tpu.reciprocal %32 {approx = true} : vector<8x1xf32> -> vector<8x1xf32>
    %34 = vector.broadcast %33 : vector<8x1xf32> to vector<8x8xf32>
    %35 = arith.mulf %30, %34 : vector<8x8xf32>
    %36 = arith.truncf %35 : vector<8x8xf32> to vector<8x8xbf16>
    %cst_16 = arith.constant dense<0.000000e+00> : vector<8x64xf32>
    %37 = tpu.matmul %36, %20, %cst_16 {dimension_numbers = #tpu.dot_dimension_numbers<[1], [0], [0], [1], [0, 0, 1, 1], [], []>} : vector<8x8xbf16>, vector<8x64xbf16>, vector<8x64xf32> -> vector<8x64xf32>
    %38 = vector.extract_strided_slice %14 {offsets = [0, 64], sizes = [8, 64], strides = [1, 1]} : vector<8x384xf32> to vector<8x64xf32>
    %39 = arith.truncf %38 : vector<8x64xf32> to vector<8x64xbf16>
    %40 = vector.extract_strided_slice %14 {offsets = [0, 192], sizes = [8, 64], strides = [1, 1]} : vector<8x384xf32> to vector<8x64xf32>
    %41 = arith.truncf %40 : vector<8x64xf32> to vector<8x64xbf16>
    %42 = vector.extract_strided_slice %14 {offsets = [0, 320], sizes = [8, 64], strides = [1, 1]} : vector<8x384xf32> to vector<8x64xf32>
    %43 = arith.truncf %42 : vector<8x64xf32> to vector<8x64xbf16>
    %cst_17 = arith.constant dense<0.000000e+00> : vector<8x8xf32>
    %44 = tpu.matmul %39, %41, %cst_17 {dimension_numbers = #tpu.dot_dimension_numbers<[1], [1], [0], [0], [0, 0, 1, 0], [], []>} : vector<8x64xbf16>, vector<8x64xbf16>, vector<8x8xf32> -> vector<8x8xf32>
    %cst_18 = arith.constant 1.250000e-01 : f32
    %45 = vector.broadcast %cst_18 : f32 to vector<8x8xf32>
    %46 = arith.mulf %44, %45 : vector<8x8xf32>
    %47 = vector.broadcast %6 : vector<1x8xf32> to vector<8x8xf32>
    %48 = arith.addf %46, %47 : vector<8x8xf32>
    %cst_19 = arith.constant dense<0xFF800000> : vector<8xf32>
    %49 = vector.multi_reduction <maximumf>, %48, %cst_19 [1] : vector<8x8xf32> to vector<8xf32>
    %50 = vector.shape_cast %49 : vector<8xf32> to vector<8x1xf32>
    %51 = vector.broadcast %50 : vector<8x1xf32> to vector<8x8xf32>
    %52 = arith.subf %48, %51 : vector<8x8xf32>
    %53 = math.exp %52 : vector<8x8xf32>
    %cst_20 = arith.constant dense<0.000000e+00> : vector<8xf32>
    %54 = vector.multi_reduction <add>, %53, %cst_20 [1] : vector<8x8xf32> to vector<8xf32>
    %55 = vector.shape_cast %54 : vector<8xf32> to vector<8x1xf32>
    %56 = tpu.reciprocal %55 {approx = true} : vector<8x1xf32> -> vector<8x1xf32>
    %57 = vector.broadcast %56 : vector<8x1xf32> to vector<8x8xf32>
    %58 = arith.mulf %53, %57 : vector<8x8xf32>
    %59 = arith.truncf %58 : vector<8x8xf32> to vector<8x8xbf16>
    %cst_21 = arith.constant dense<0.000000e+00> : vector<8x64xf32>
    %60 = tpu.matmul %59, %43, %cst_21 {dimension_numbers = #tpu.dot_dimension_numbers<[1], [0], [0], [1], [0, 0, 1, 1], [], []>} : vector<8x8xbf16>, vector<8x64xbf16>, vector<8x64xf32> -> vector<8x64xf32>
    %61 = tpu.concatenate %37, %60 in 1 : vector<8x64xf32>, vector<8x64xf32> -> vector<8x128xf32>
    %62 = arith.truncf %61 : vector<8x128xf32> to vector<8x128xbf16>
    %c0_22 = arith.constant 0 : index
    %c0_23 = arith.constant 0 : index
    %c0_24 = arith.constant 0 : index
    %63 = vector.load %arg6[%c0_22, %c0_23, %c0_24] : memref<1x128x64xbf16, #tpu.memory_space<vmem>>, vector<1x128x64xbf16>
    %64 = vector.shape_cast %63 : vector<1x128x64xbf16> to vector<128x64xbf16>
    %cst_25 = arith.constant dense<0.000000e+00> : vector<8x64xf32>
    %65 = tpu.matmul %62, %64, %cst_25 {dimension_numbers = #tpu.dot_dimension_numbers<[1], [0], [0], [1], [0, 0, 1, 1], [], []>} : vector<8x128xbf16>, vector<128x64xbf16>, vector<8x64xf32> -> vector<8x64xf32>
    %c0_26 = arith.constant 0 : index
    %c0_27 = arith.constant 0 : index
    %c0_28 = arith.constant 0 : index
    %66 = vector.load %arg7[%c0_26, %c0_27, %c0_28] : memref<1x1x64xf32, #tpu.memory_space<vmem>>, vector<1x1x64xf32>
    %67 = vector.shape_cast %66 : vector<1x1x64xf32> to vector<1x64xf32>
    %68 = vector.broadcast %67 : vector<1x64xf32> to vector<8x64xf32>
    %69 = arith.addf %65, %68 : vector<8x64xf32>
    %70 = arith.addf %4, %69 : vector<8x64xf32>
    %c0_29 = arith.constant 0 : index
    %c0_30 = arith.constant 0 : index
    %c0_31 = arith.constant 0 : index
    %71 = vector.load %arg8[%c0_29, %c0_30, %c0_31] : memref<1x1x64xf32, #tpu.memory_space<vmem>>, vector<1x1x64xf32>
    %72 = vector.shape_cast %71 : vector<1x1x64xf32> to vector<1x64xf32>
    %c0_32 = arith.constant 0 : index
    %c0_33 = arith.constant 0 : index
    %c0_34 = arith.constant 0 : index
    %73 = vector.load %arg9[%c0_32, %c0_33, %c0_34] : memref<1x1x64xf32, #tpu.memory_space<vmem>>, vector<1x1x64xf32>
    %74 = vector.shape_cast %73 : vector<1x1x64xf32> to vector<1x64xf32>
    %cst_35 = arith.constant dense<0.000000e+00> : vector<8xf32>
    %75 = vector.multi_reduction <add>, %70, %cst_35 [1] : vector<8x64xf32> to vector<8xf32>
    %76 = vector.shape_cast %75 : vector<8xf32> to vector<8x1xf32>
    %cst_36 = arith.constant 6.400000e+01 : f32
    %77 = vector.broadcast %cst_36 : f32 to vector<8x1xf32>
    %78 = arith.divf %76, %77 : vector<8x1xf32>
    %79 = vector.broadcast %78 : vector<8x1xf32> to vector<8x64xf32>
    %80 = arith.subf %70, %79 : vector<8x64xf32>
    %81 = arith.mulf %80, %80 : vector<8x64xf32>
    %cst_37 = arith.constant dense<0.000000e+00> : vector<8xf32>
    %82 = vector.multi_reduction <add>, %81, %cst_37 [1] : vector<8x64xf32> to vector<8xf32>
    %83 = vector.shape_cast %82 : vector<8xf32> to vector<8x1xf32>
    %cst_38 = arith.constant 6.400000e+01 : f32
    %84 = vector.broadcast %cst_38 : f32 to vector<8x1xf32>
    %85 = arith.divf %83, %84 : vector<8x1xf32>
    %86 = vector.broadcast %78 : vector<8x1xf32> to vector<8x64xf32>
    %87 = arith.subf %70, %86 : vector<8x64xf32>
    %cst_39 = arith.constant 9.99999997E-7 : f32
    %88 = vector.broadcast %cst_39 : f32 to vector<8x1xf32>
    %89 = arith.addf %85, %88 : vector<8x1xf32>
    %90 = math.rsqrt %89 : vector<8x1xf32>
    %91 = vector.broadcast %90 : vector<8x1xf32> to vector<8x64xf32>
    %92 = arith.mulf %87, %91 : vector<8x64xf32>
    %93 = vector.broadcast %72 : vector<1x64xf32> to vector<8x64xf32>
    %94 = arith.mulf %92, %93 : vector<8x64xf32>
    %95 = vector.broadcast %74 : vector<1x64xf32> to vector<8x64xf32>
    %96 = arith.addf %94, %95 : vector<8x64xf32>
    %97 = arith.truncf %96 : vector<8x64xf32> to vector<8x64xbf16>
    %c0_40 = arith.constant 0 : index
    %c0_41 = arith.constant 0 : index
    %c0_42 = arith.constant 0 : index
    %98 = vector.load %arg10[%c0_40, %c0_41, %c0_42] : memref<1x64x128xbf16, #tpu.memory_space<vmem>>, vector<1x64x128xbf16>
    %99 = vector.shape_cast %98 : vector<1x64x128xbf16> to vector<64x128xbf16>
    %cst_43 = arith.constant dense<0.000000e+00> : vector<8x128xf32>
    %100 = tpu.matmul %97, %99, %cst_43 {dimension_numbers = #tpu.dot_dimension_numbers<[1], [0], [0], [1], [0, 0, 1, 1], [], []>} : vector<8x64xbf16>, vector<64x128xbf16>, vector<8x128xf32> -> vector<8x128xf32>
    %c0_44 = arith.constant 0 : index
    %c0_45 = arith.constant 0 : index
    %c0_46 = arith.constant 0 : index
    %101 = vector.load %arg11[%c0_44, %c0_45, %c0_46] : memref<1x1x128xf32, #tpu.memory_space<vmem>>, vector<1x1x128xf32>
    %102 = vector.shape_cast %101 : vector<1x1x128xf32> to vector<1x128xf32>
    %103 = vector.broadcast %102 : vector<1x128xf32> to vector<8x128xf32>
    %104 = arith.addf %100, %103 : vector<8x128xf32>
    %cst_47 = arith.constant 0.000000e+00 : f32
    %105 = vector.broadcast %cst_47 : f32 to vector<8x128xf32>
    %106 = arith.maximumf %104, %105 : vector<8x128xf32>
    %107 = arith.truncf %106 : vector<8x128xf32> to vector<8x128xbf16>
    %c0_48 = arith.constant 0 : index
    %c0_49 = arith.constant 0 : index
    %c0_50 = arith.constant 0 : index
    %108 = vector.load %arg12[%c0_48, %c0_49, %c0_50] : memref<1x128x64xbf16, #tpu.memory_space<vmem>>, vector<1x128x64xbf16>
    %109 = vector.shape_cast %108 : vector<1x128x64xbf16> to vector<128x64xbf16>
    %cst_51 = arith.constant dense<0.000000e+00> : vector<8x64xf32>
    %110 = tpu.matmul %107, %109, %cst_51 {dimension_numbers = #tpu.dot_dimension_numbers<[1], [0], [0], [1], [0, 0, 1, 1], [], []>} : vector<8x128xbf16>, vector<128x64xbf16>, vector<8x64xf32> -> vector<8x64xf32>
    %c0_52 = arith.constant 0 : index
    %c0_53 = arith.constant 0 : index
    %c0_54 = arith.constant 0 : index
    %111 = vector.load %arg13[%c0_52, %c0_53, %c0_54] : memref<1x1x64xf32, #tpu.memory_space<vmem>>, vector<1x1x64xf32>
    %112 = vector.shape_cast %111 : vector<1x1x64xf32> to vector<1x64xf32>
    %113 = vector.broadcast %112 : vector<1x64xf32> to vector<8x64xf32>
    %114 = arith.addf %110, %113 : vector<8x64xf32>
    %115 = arith.addf %96, %114 : vector<8x64xf32>
    %c0_55 = arith.constant 0 : index
    %c0_56 = arith.constant 0 : index
    %c0_57 = arith.constant 0 : index
    %116 = vector.load %arg14[%c0_55, %c0_56, %c0_57] : memref<1x1x64xf32, #tpu.memory_space<vmem>>, vector<1x1x64xf32>
    %117 = vector.shape_cast %116 : vector<1x1x64xf32> to vector<1x64xf32>
    %c0_58 = arith.constant 0 : index
    %c0_59 = arith.constant 0 : index
    %c0_60 = arith.constant 0 : index
    %118 = vector.load %arg15[%c0_58, %c0_59, %c0_60] : memref<1x1x64xf32, #tpu.memory_space<vmem>>, vector<1x1x64xf32>
    %119 = vector.shape_cast %118 : vector<1x1x64xf32> to vector<1x64xf32>
    %cst_61 = arith.constant dense<0.000000e+00> : vector<8xf32>
    %120 = vector.multi_reduction <add>, %115, %cst_61 [1] : vector<8x64xf32> to vector<8xf32>
    %121 = vector.shape_cast %120 : vector<8xf32> to vector<8x1xf32>
    %cst_62 = arith.constant 6.400000e+01 : f32
    %122 = vector.broadcast %cst_62 : f32 to vector<8x1xf32>
    %123 = arith.divf %121, %122 : vector<8x1xf32>
    %124 = vector.broadcast %123 : vector<8x1xf32> to vector<8x64xf32>
    %125 = arith.subf %115, %124 : vector<8x64xf32>
    %126 = arith.mulf %125, %125 : vector<8x64xf32>
    %cst_63 = arith.constant dense<0.000000e+00> : vector<8xf32>
    %127 = vector.multi_reduction <add>, %126, %cst_63 [1] : vector<8x64xf32> to vector<8xf32>
    %128 = vector.shape_cast %127 : vector<8xf32> to vector<8x1xf32>
    %cst_64 = arith.constant 6.400000e+01 : f32
    %129 = vector.broadcast %cst_64 : f32 to vector<8x1xf32>
    %130 = arith.divf %128, %129 : vector<8x1xf32>
    %131 = vector.broadcast %123 : vector<8x1xf32> to vector<8x64xf32>
    %132 = arith.subf %115, %131 : vector<8x64xf32>
    %cst_65 = arith.constant 9.99999997E-7 : f32
    %133 = vector.broadcast %cst_65 : f32 to vector<8x1xf32>
    %134 = arith.addf %130, %133 : vector<8x1xf32>
    %135 = math.rsqrt %134 : vector<8x1xf32>
    %136 = vector.broadcast %135 : vector<8x1xf32> to vector<8x64xf32>
    %137 = arith.mulf %132, %136 : vector<8x64xf32>
    %138 = vector.broadcast %117 : vector<1x64xf32> to vector<8x64xf32>
    %139 = arith.mulf %137, %138 : vector<8x64xf32>
    %140 = vector.broadcast %119 : vector<1x64xf32> to vector<8x64xf32>
    %141 = arith.addf %139, %140 : vector<8x64xf32>
    %c0_66 = arith.constant 0 : index
    %c0_67 = arith.constant 0 : index
    %c0_68 = arith.constant 0 : index
    %142 = vector.load %arg16[%c0_66, %c0_67, %c0_68] : memref<1x8x64xf32, #tpu.memory_space<vmem>>, vector<1x8x64xf32>
    %143 = vector.shape_cast %142 : vector<1x8x64xf32> to vector<8x64xf32>
    %144 = vector.shape_cast %141 : vector<8x64xf32> to vector<1x8x64xf32>
    tpu.vector_store %arg16[%c0_66, %c0_67, %c0_68], %144 {strides = array<i32>} : memref<1x8x64xf32, #tpu.memory_space<vmem>>, vector<1x8x64xf32>,
    return
  }
  func.func @transform_0(%arg0: i32, %arg1: i32) -> (i32, i32, i32) {
    %c0_i32 = arith.constant 0 : i32
    %c0_i32_0 = arith.constant 0 : i32
    %c0_i32_1 = arith.constant 0 : i32
    return %arg0, %c0_i32, %c0_i32_0 : i32, i32, i32
  }
  func.func @transform_1(%arg0: i32, %arg1: i32) -> (i32, i32, i32) {
    %c0_i32 = arith.constant 0 : i32
    %c0_i32_0 = arith.constant 0 : i32
    %c0_i32_1 = arith.constant 0 : i32
    return %arg0, %c0_i32, %c0_i32_0 : i32, i32, i32
  }
  func.func @transform_2(%arg0: i32, %arg1: i32) -> (i32, i32, i32) {
    %c0_i32 = arith.constant 0 : i32
    %c0_i32_0 = arith.constant 0 : i32
    %c0_i32_1 = arith.constant 0 : i32
    return %arg1, %c0_i32, %c0_i32_0 : i32, i32, i32
  }
  func.func @transform_3(%arg0: i32, %arg1: i32) -> (i32, i32, i32) {
    %c0_i32 = arith.constant 0 : i32
    %c0_i32_0 = arith.constant 0 : i32
    %c0_i32_1 = arith.constant 0 : i32
    return %arg1, %c0_i32, %c0_i32_0 : i32, i32, i32
  }
  func.func @transform_4(%arg0: i32, %arg1: i32) -> (i32, i32, i32) {
    %c0_i32 = arith.constant 0 : i32
    %c0_i32_0 = arith.constant 0 : i32
    %c0_i32_1 = arith.constant 0 : i32
    return %arg1, %c0_i32, %c0_i32_0 : i32, i32, i32
  }
  func.func @transform_5(%arg0: i32, %arg1: i32) -> (i32, i32, i32) {
    %c0_i32 = arith.constant 0 : i32
    %c0_i32_0 = arith.constant 0 : i32
    %c0_i32_1 = arith.constant 0 : i32
    return %arg1, %c0_i32, %c0_i32_0 : i32, i32, i32
  }
  func.func @transform_6(%arg0: i32, %arg1: i32) -> (i32, i32, i32) {
    %c0_i32 = arith.constant 0 : i32
    %c0_i32_0 = arith.constant 0 : i32
    %c0_i32_1 = arith.constant 0 : i32
    return %arg1, %c0_i32, %c0_i32_0 : i32, i32, i32
  }
  func.func @transform_7(%arg0: i32, %arg1: i32) -> (i32, i32, i32) {
    %c0_i32 = arith.constant 0 : i32
    %c0_i32_0 = arith.constant 0 : i32
    %c0_i32_1 = arith.constant 0 : i32
    return %arg1, %c0_i32, %c0_i32_0 : i32, i32, i32
  }
  func.func @transform_8(%arg0: i32, %arg1: i32) -> (i32, i32, i32) {
    %c0_i32 = arith.constant 0 : i32
    %c0_i32_0 = arith.constant 0 : i32
    %c0_i32_1 = arith.constant 0 : i32
    return %arg1, %c0_i32, %c0_i32_0 : i32, i32, i32
  }
  func.func @transform_9(%arg0: i32, %arg1: i32) -> (i32, i32, i32) {
    %c0_i32 = arith.constant 0 : i32
    %c0_i32_0 = arith.constant 0 : i32
    %c0_i32_1 = arith.constant 0 : i32
    return %arg1, %c0_i32, %c0_i32_0 : i32, i32, i32
  }
  func.func @transform_10(%arg0: i32, %arg1: i32) -> (i32, i32, i32) {
    %c0_i32 = arith.constant 0 : i32
    %c0_i32_0 = arith.constant 0 : i32
    %c0_i32_1 = arith.constant 0 : i32
    return %arg1, %c0_i32, %c0_i32_0 : i32, i32, i32
  }
  func.func @transform_11(%arg0: i32, %arg1: i32) -> (i32, i32, i32) {
    %c0_i32 = arith.constant 0 : i32
    %c0_i32_0 = arith.constant 0 : i32
    %c0_i32_1 = arith.constant 0 : i32
    return %arg1, %c0_i32, %c0_i32_0 : i32, i32, i32
  }
  func.func @transform_12(%arg0: i32, %arg1: i32) -> (i32, i32, i32) {
    %c0_i32 = arith.constant 0 : i32
    %c0_i32_0 = arith.constant 0 : i32
    %c0_i32_1 = arith.constant 0 : i32
    return %arg1, %c0_i32, %c0_i32_0 : i32, i32, i32
  }
  func.func @transform_13(%arg0: i32, %arg1: i32) -> (i32, i32, i32) {
    %c0_i32 = arith.constant 0 : i32
    %c0_i32_0 = arith.constant 0 : i32
    %c0_i32_1 = arith.constant 0 : i32
    return %arg1, %c0_i32, %c0_i32_0 : i32, i32, i32
  }
  func.func @transform_14(%arg0: i32, %arg1: i32) -> (i32, i32, i32) {
    %c0_i32 = arith.constant 0 : i32
    %c0_i32_0 = arith.constant 0 : i32
    %c0_i32_1 = arith.constant 0 : i32
    return %arg0, %c0_i32, %c0_i32_0 : i32, i32, i32
  }
}

</mosaic_0001>

<llo_original>
// kernel: tpu_custom_call.1
$region0: #{tpu_custom_call.1}
  #allocation0 [shape = 'u32[]', space=smem, size = 0x4, offset = 0x4, fixed_abs, tag = 'smem constant byte address 0x4 - core index']
  #allocation1 [shape = 'u32[144,128]{1,0:T(1,128)}', space=vmem, size = 0x12000, scoped, tag = 'internal scratch']
  %s0 = inlined_call_operand.vmem [shape: f32[2,8,64], index: 0, kind: input, shape index: {}]
  %s1 = inlined_call_operand.vmem [shape: f32[2,1,8], index: 1, kind: input, shape index: {}]
  %s2 = inlined_call_operand.vmem [shape: bf16[2,64,384], index: 2, kind: input, shape index: {}]
  %s3 = inlined_call_operand.vmem [shape: f32[2,1,384], index: 3, kind: input, shape index: {}]
  %s4 = inlined_call_operand.vmem [shape: bf16[2,128,64], index: 4, kind: input, shape index: {}]
  %s5 = inlined_call_operand.vmem [shape: f32[2,1,64], index: 5, kind: input, shape index: {}]
  %s6 = inlined_call_operand.vmem [shape: f32[2,1,64], index: 6, kind: input, shape index: {}]
  %s7 = inlined_call_operand.vmem [shape: f32[2,1,64], index: 7, kind: input, shape index: {}]
  %s8 = inlined_call_operand.vmem [shape: bf16[2,64,128], index: 8, kind: input, shape index: {}]
  %s9 = inlined_call_operand.vmem [shape: f32[2,1,128], index: 9, kind: input, shape index: {}]
  %s10 = inlined_call_operand.vmem [shape: bf16[2,128,64], index: 10, kind: input, shape index: {}]
  %s11 = inlined_call_operand.vmem [shape: f32[2,1,64], index: 11, kind: input, shape index: {}]
  %s12 = inlined_call_operand.vmem [shape: f32[2,1,64], index: 12, kind: input, shape index: {}]
  %s13 = inlined_call_operand.vmem [shape: f32[2,1,64], index: 13, kind: input, shape index: {}]
  %s14 = inlined_call_operand.hbm [shape: f32[2,8,64], index: 14, kind: output, shape index: {}]
  %s15 = sld [smem:[#allocation0]]
  $region93: #{tpu_custom_call.1} parent=0
    _
  %s17 = ssub.s32 1, %s15
  %s18 = scalar_select 0, %s17, %s15
  $region1: #{tpu_custom_call.1} parent=0
    #allocation2 [shape = 'u8[8192]{0}', space=vmem, size = 0x2000, scoped, tag = 'output window, operand 0']
    #allocation3 [shape = 's32[2]{0}', space=sflag, size = 0x8, scoped, tag = 'scoped memory for tpu_custom_call.1']
    %19 = vsyncpa [#allocation3], 0
    %s20 = scalar_lea.sflag [#allocation3], 1
    %21 = vsyncpa %s20, 0
    loop: start=0, step=1, limit=6
    $region2: #{tpu_custom_call.1} parent=1 // loop_pre_header
      _
    $region3: #{tpu_custom_call.1} parent=1 // loop_header
      %s23 = sphi 0, %s27
      %p24 = scmp.ge.s32.totalorder %s23, 6
      %s30 = sphi 0, %s42
      %s31 = sphi 0, %s38
      %s32 = sphi 0, %s30
      %s33 = sphi 0, %s31
      %s34 = sphi 0, %s32
      %s35 = sphi 0, %s33
      %s45 = sphi 0, %s47
      %s48 = sphi 0, %s45
      %s49 = sphi 0, %s48
      %s65 = sphi 0, %s49
      %s71 = sphi 0, %s73
      %s74 = sphi 0, %s71
      %s75 = sphi 0, %s74
      %s91 = sphi 0, %s75
      %s97 = sphi 0, %s99
      %s100 = sphi 0, %s97
      %s101 = sphi 0, %s100
      %s117 = sphi 0, %s101
      %s123 = sphi 0, %s125
      %s126 = sphi 0, %s123
      %s127 = sphi 0, %s126
      %s143 = sphi 0, %s127
      %s149 = sphi 0, %s151
      %s152 = sphi 0, %s149
      %s153 = sphi 0, %s152
      %s169 = sphi 0, %s153
      %s175 = sphi 0, %s177
      %s178 = sphi 0, %s175
      %s179 = sphi 0, %s178
      %s195 = sphi 0, %s179
      %s201 = sphi 0, %s203
      %s204 = sphi 0, %s201
      %s205 = sphi 0, %s204
      %s221 = sphi 0, %s205
      %s227 = sphi 0, %s229
      %s230 = sphi 0, %s227
      %s231 = sphi 0, %s230
      %s247 = sphi 0, %s231
      %s253 = sphi 0, %s255
      %s256 = sphi 0, %s253
      %s257 = sphi 0, %s256
      %s273 = sphi 0, %s257
      %s279 = sphi 0, %s281
      %s282 = sphi 0, %s279
      %s283 = sphi 0, %s282
      %s299 = sphi 0, %s283
      %s305 = sphi 0, %s307
      %s308 = sphi 0, %s305
      %s309 = sphi 0, %s308
      %s325 = sphi 0, %s309
      %s331 = sphi 0, %s333
      %s334 = sphi 0, %s331
      %s335 = sphi 0, %s334
      %s351 = sphi 0, %s335
      %s357 = sphi 0, %s359
      %s360 = sphi 0, %s357
      %s361 = sphi 0, %s360
      %s377 = sphi 0, %s361
      %s383 = sphi 0, %s385
      %s386 = sphi 0, %s383
      %s387 = sphi 0, %s386
      %s403 = sphi 0, %s387
      %s409 = sphi 0, %s411
      %s412 = sphi 0, %s409
      %s413 = sphi 0, %s412
      %s429 = sphi 0, %s413
    $region4: #{tpu_custom_call.1} parent=1 // loop_header_branch
      %26 = sbr.rel (%p24) target = $region8
    $region5: #{tpu_custom_call.1} parent=1 // loop_body
      %s28 = ssub.s32 %s23, 1
      %s29 = ssub.s32 %s23, 2
      %s36 = sadd.s32 1, %s31
      %p37 = scmp.ge.s32.totalorder %s36, 2
      %s38 = scalar_select %p37, 0, %s36
      %s39 = sadd.s32 1, %s30
      %s40 = scalar_select %p37, %s39, %s30
      %p41 = scmp.ge.s32.totalorder %s40, 2
      %s42 = scalar_select %p41, 0, %s40
      %s43 = ssub.s32 %s30, %s42
      %p44 = scmp.eq.s32.totalorder %s43, 0
      %s46 = sadd.s32 %s45, 1
      %s47 = scalar_select %p44, %s45, %s46
      %p50 = pneg %p44
      %p51 = scmp.eq.s32.totalorder %s23, 3
      %p52 = por %p50, %p51
      %p53 = scmp.ne.s32.totalorder %s45, %s48
      %p54 = scmp.eq.s32.totalorder %s23, 0
      %p55 = por %p53, %p54
      %p56 = scmp.ne.s32.totalorder %s45, %s48
      %p57 = scmp.eq.s32.totalorder %s28, 3
      %p58 = por %p56, %p57
      %p59 = scmp.ne.s32.totalorder %s48, %s49
      %p60 = scmp.eq.s32.totalorder %s28, 0
      %p61 = por %p59, %p60
      %p62 = scmp.ne.s32.totalorder %s48, %s49
      %p63 = scmp.eq.s32.totalorder %s29, 3
      %p64 = por %p62, %p63
      %p66 = scmp.ne.s32.totalorder %s49, %s65
      %p67 = scmp.eq.s32.totalorder %s29, 0
      %p68 = por %p66, %p67
      %s69 = ssub.s32 %s30, %s42
      %p70 = scmp.eq.s32.totalorder %s69, 0
      %s72 = sadd.s32 %s71, 1
      %s73 = scalar_select %p70, %s71, %s72
      %p76 = pneg %p70
      %p77 = scmp.eq.s32.totalorder %s23, 3
      %p78 = por %p76, %p77
      %p79 = scmp.ne.s32.totalorder %s71, %s74
      %p80 = scmp.eq.s32.totalorder %s23, 0
      %p81 = por %p79, %p80
      %p82 = scmp.ne.s32.totalorder %s71, %s74
      %p83 = scmp.eq.s32.totalorder %s28, 3
      %p84 = por %p82, %p83
      %p85 = scmp.ne.s32.totalorder %s74, %s75
      %p86 = scmp.eq.s32.totalorder %s28, 0
      %p87 = por %p85, %p86
      %p88 = scmp.ne.s32.totalorder %s74, %s75
      %p89 = scmp.eq.s32.totalorder %s29, 3
      %p90 = por %p88, %p89
      %p92 = scmp.ne.s32.totalorder %s75, %s91
      %p93 = scmp.eq.s32.totalorder %s29, 0
      %p94 = por %p92, %p93
      %s95 = ssub.s32 %s31, %s38
      %p96 = scmp.eq.s32.totalorder %s95, 0
      %s98 = sadd.s32 %s97, 1
      %s99 = scalar_select %p96, %s97, %s98
      %p102 = pneg %p96
      %p103 = scmp.eq.s32.totalorder %s23, 3
      %p104 = por %p102, %p103
      %p105 = scmp.ne.s32.totalorder %s97, %s100
      %p106 = scmp.eq.s32.totalorder %s23, 0
      %p107 = por %p105, %p106
      %p108 = scmp.ne.s32.totalorder %s97, %s100
      %p109 = scmp.eq.s32.totalorder %s28, 3
      %p110 = por %p108, %p109
      %p111 = scmp.ne.s32.totalorder %s100, %s101
      %p112 = scmp.eq.s32.totalorder %s28, 0
      %p113 = por %p111, %p112
      %p114 = scmp.ne.s32.totalorder %s100, %s101
      %p115 = scmp.eq.s32.totalorder %s29, 3
      %p116 = por %p114, %p115
      %p118 = scmp.ne.s32.totalorder %s101, %s117
      %p119 = scmp.eq.s32.totalorder %s29, 0
      %p120 = por %p118, %p119
      %s121 = ssub.s32 %s31, %s38
      %p122 = scmp.eq.s32.totalorder %s121, 0
      %s124 = sadd.s32 %s123, 1
      %s125 = scalar_select %p122, %s123, %s124
      %p128 = pneg %p122
      %p129 = scmp.eq.s32.totalorder %s23, 3
      %p130 = por %p128, %p129
      %p131 = scmp.ne.s32.totalorder %s123, %s126
      %p132 = scmp.eq.s32.totalorder %s23, 0
      %p133 = por %p131, %p132
      %p134 = scmp.ne.s32.totalorder %s123, %s126
      %p135 = scmp.eq.s32.totalorder %s28, 3
      %p136 = por %p134, %p135
      %p137 = scmp.ne.s32.totalorder %s126, %s127
      %p138 = scmp.eq.s32.totalorder %s28, 0
      %p139 = por %p137, %p138
      %p140 = scmp.ne.s32.totalorder %s126, %s127
      %p141 = scmp.eq.s32.totalorder %s29, 3
      %p142 = por %p140, %p141
      %p144 = scmp.ne.s32.totalorder %s127, %s143
      %p145 = scmp.eq.s32.totalorder %s29, 0
      %p146 = por %p144, %p145
      %s147 = ssub.s32 %s31, %s38
      %p148 = scmp.eq.s32.totalorder %s147, 0
      %s150 = sadd.s32 %s149, 1
      %s151 = scalar_select %p148, %s149, %s150
      %p154 = pneg %p148
      %p155 = scmp.eq.s32.totalorder %s23, 3
      %p156 = por %p154, %p155
      %p157 = scmp.ne.s32.totalorder %s149, %s152
      %p158 = scmp.eq.s32.totalorder %s23, 0
      %p159 = por %p157, %p158
      %p160 = scmp.ne.s32.totalorder %s149, %s152
      %p161 = scmp.eq.s32.totalorder %s28, 3
      %p162 = por %p160, %p161
      %p163 = scmp.ne.s32.totalorder %s152, %s153
      %p164 = scmp.eq.s32.totalorder %s28, 0
      %p165 = por %p163, %p164
      %p166 = scmp.ne.s32.totalorder %s152, %s153
      %p167 = scmp.eq.s32.totalorder %s29, 3
      %p168 = por %p166, %p167
      %p170 = scmp.ne.s32.totalorder %s153, %s169
      %p171 = scmp.eq.s32.totalorder %s29, 0
      %p172 = por %p170, %p171
      %s173 = ssub.s32 %s31, %s38
      %p174 = scmp.eq.s32.totalorder %s173, 0
      %s176 = sadd.s32 %s175, 1
      %s177 = scalar_select %p174, %s175, %s176
      %p180 = pneg %p174
      %p181 = scmp.eq.s32.totalorder %s23, 3
      %p182 = por %p180, %p181
      %p183 = scmp.ne.s32.totalorder %s175, %s178
      %p184 = scmp.eq.s32.totalorder %s23, 0
      %p185 = por %p183, %p184
      %p186 = scmp.ne.s32.totalorder %s175, %s178
      %p187 = scmp.eq.s32.totalorder %s28, 3
      %p188 = por %p186, %p187
      %p189 = scmp.ne.s32.totalorder %s178, %s179
      %p190 = scmp.eq.s32.totalorder %s28, 0
      %p191 = por %p189, %p190
      %p192 = scmp.ne.s32.totalorder %s178, %s179
      %p193 = scmp.eq.s32.totalorder %s29, 3
      %p194 = por %p192, %p193
      %p196 = scmp.ne.s32.totalorder %s179, %s195
      %p197 = scmp.eq.s32.totalorder %s29, 0
      %p198 = por %p196, %p197
      %s199 = ssub.s32 %s31, %s38
      %p200 = scmp.eq.s32.totalorder %s199, 0
      %s202 = sadd.s32 %s201, 1
      %s203 = scalar_select %p200, %s201, %s202
      %p206 = pneg %p200
      %p207 = scmp.eq.s32.totalorder %s23, 3
      %p208 = por %p206, %p207
      %p209 = scmp.ne.s32.totalorder %s201, %s204
      %p210 = scmp.eq.s32.totalorder %s23, 0
      %p211 = por %p209, %p210
      %p212 = scmp.ne.s32.totalorder %s201, %s204
      %p213 = scmp.eq.s32.totalorder %s28, 3
      %p214 = por %p212, %p213
      %p215 = scmp.ne.s32.totalorder %s204, %s205
      %p216 = scmp.eq.s32.totalorder %s28, 0
      %p217 = por %p215, %p216
      %p218 = scmp.ne.s32.totalorder %s204, %s205
      %p219 = scmp.eq.s32.totalorder %s29, 3
      %p220 = por %p218, %p219
      %p222 = scmp.ne.s32.totalorder %s205, %s221
      %p223 = scmp.eq.s32.totalorder %s29, 0
      %p224 = por %p222, %p223
      %s225 = ssub.s32 %s31, %s38
      %p226 = scmp.eq.s32.totalorder %s225, 0
      %s228 = sadd.s32 %s227, 1
      %s229 = scalar_select %p226, %s227, %s228
      %p232 = pneg %p226
      %p233 = scmp.eq.s32.totalorder %s23, 3
      %p234 = por %p232, %p233
      %p235 = scmp.ne.s32.totalorder %s227, %s230
      %p236 = scmp.eq.s32.totalorder %s23, 0
      %p237 = por %p235, %p236
      %p238 = scmp.ne.s32.totalorder %s227, %s230
      %p239 = scmp.eq.s32.totalorder %s28, 3
      %p240 = por %p238, %p239
      %p241 = scmp.ne.s32.totalorder %s230, %s231
      %p242 = scmp.eq.s32.totalorder %s28, 0
      %p243 = por %p241, %p242
      %p244 = scmp.ne.s32.totalorder %s230, %s231
      %p245 = scmp.eq.s32.totalorder %s29, 3
      %p246 = por %p244, %p245
      %p248 = scmp.ne.s32.totalorder %s231, %s247
      %p249 = scmp.eq.s32.totalorder %s29, 0
      %p250 = por %p248, %p249
      %s251 = ssub.s32 %s31, %s38
      %p252 = scmp.eq.s32.totalorder %s251, 0
      %s254 = sadd.s32 %s253, 1
      %s255 = scalar_select %p252, %s253, %s254
      %p258 = pneg %p252
      %p259 = scmp.eq.s32.totalorder %s23, 3
      %p260 = por %p258, %p259
      %p261 = scmp.ne.s32.totalorder %s253, %s256
      %p262 = scmp.eq.s32.totalorder %s23, 0
      %p263 = por %p261, %p262
      %p264 = scmp.ne.s32.totalorder %s253, %s256
      %p265 = scmp.eq.s32.totalorder %s28, 3
      %p266 = por %p264, %p265
      %p267 = scmp.ne.s32.totalorder %s256, %s257
      %p268 = scmp.eq.s32.totalorder %s28, 0
      %p269 = por %p267, %p268
      %p270 = scmp.ne.s32.totalorder %s256, %s257
      %p271 = scmp.eq.s32.totalorder %s29, 3
      %p272 = por %p270, %p271
      %p274 = scmp.ne.s32.totalorder %s257, %s273
      %p275 = scmp.eq.s32.totalorder %s29, 0
      %p276 = por %p274, %p275
      %s277 = ssub.s32 %s31, %s38
      %p278 = scmp.eq.s32.totalorder %s277, 0
      %s280 = sadd.s32 %s279, 1
      %s281 = scalar_select %p278, %s279, %s280
      %p284 = pneg %p278
      %p285 = scmp.eq.s32.totalorder %s23, 3
      %p286 = por %p284, %p285
      %p287 = scmp.ne.s32.totalorder %s279, %s282
      %p288 = scmp.eq.s32.totalorder %s23, 0
      %p289 = por %p287, %p288
      %p290 = scmp.ne.s32.totalorder %s279, %s282
      %p291 = scmp.eq.s32.totalorder %s28, 3
      %p292 = por %p290, %p291
      %p293 = scmp.ne.s32.totalorder %s282, %s283
      %p294 = scmp.eq.s32.totalorder %s28, 0
      %p295 = por %p293, %p294
      %p296 = scmp.ne.s32.totalorder %s282, %s283
      %p297 = scmp.eq.s32.totalorder %s29, 3
      %p298 = por %p296, %p297
      %p300 = scmp.ne.s32.totalorder %s283, %s299
      %p301 = scmp.eq.s32.totalorder %s29, 0
      %p302 = por %p300, %p301
      %s303 = ssub.s32 %s31, %s38
      %p304 = scmp.eq.s32.totalorder %s303, 0
      %s306 = sadd.s32 %s305, 1
      %s307 = scalar_select %p304, %s305, %s306
      %p310 = pneg %p304
      %p311 = scmp.eq.s32.totalorder %s23, 3
      %p312 = por %p310, %p311
      %p313 = scmp.ne.s32.totalorder %s305, %s308
      %p314 = scmp.eq.s32.totalorder %s23, 0
      %p315 = por %p313, %p314
      %p316 = scmp.ne.s32.totalorder %s305, %s308
      %p317 = scmp.eq.s32.totalorder %s28, 3
      %p318 = por %p316, %p317
      %p319 = scmp.ne.s32.totalorder %s308, %s309
      %p320 = scmp.eq.s32.totalorder %s28, 0
      %p321 = por %p319, %p320
      %p322 = scmp.ne.s32.totalorder %s308, %s309
      %p323 = scmp.eq.s32.totalorder %s29, 3
      %p324 = por %p322, %p323
      %p326 = scmp.ne.s32.totalorder %s309, %s325
      %p327 = scmp.eq.s32.totalorder %s29, 0
      %p328 = por %p326, %p327
      %s329 = ssub.s32 %s31, %s38
      %p330 = scmp.eq.s32.totalorder %s329, 0
      %s332 = sadd.s32 %s331, 1
      %s333 = scalar_select %p330, %s331, %s332
      %p336 = pneg %p330
      %p337 = scmp.eq.s32.totalorder %s23, 3
      %p338 = por %p336, %p337
      %p339 = scmp.ne.s32.totalorder %s331, %s334
      %p340 = scmp.eq.s32.totalorder %s23, 0
      %p341 = por %p339, %p340
      %p342 = scmp.ne.s32.totalorder %s331, %s334
      %p343 = scmp.eq.s32.totalorder %s28, 3
      %p344 = por %p342, %p343
      %p345 = scmp.ne.s32.totalorder %s334, %s335
      %p346 = scmp.eq.s32.totalorder %s28, 0
      %p347 = por %p345, %p346
      %p348 = scmp.ne.s32.totalorder %s334, %s335
      %p349 = scmp.eq.s32.totalorder %s29, 3
      %p350 = por %p348, %p349
      %p352 = scmp.ne.s32.totalorder %s335, %s351
      %p353 = scmp.eq.s32.totalorder %s29, 0
      %p354 = por %p352, %p353
      %s355 = ssub.s32 %s31, %s38
      %p356 = scmp.eq.s32.totalorder %s355, 0
      %s358 = sadd.s32 %s357, 1
      %s359 = scalar_select %p356, %s357, %s358
      %p362 = pneg %p356
      %p363 = scmp.eq.s32.totalorder %s23, 3
      %p364 = por %p362, %p363
      %p365 = scmp.ne.s32.totalorder %s357, %s360
      %p366 = scmp.eq.s32.totalorder %s23, 0
      %p367 = por %p365, %p366
      %p368 = scmp.ne.s32.totalorder %s357, %s360
      %p369 = scmp.eq.s32.totalorder %s28, 3
      %p370 = por %p368, %p369
      %p371 = scmp.ne.s32.totalorder %s360, %s361
      %p372 = scmp.eq.s32.totalorder %s28, 0
      %p373 = por %p371, %p372
      %p374 = scmp.ne.s32.totalorder %s360, %s361
      %p375 = scmp.eq.s32.totalorder %s29, 3
      %p376 = por %p374, %p375
      %p378 = scmp.ne.s32.totalorder %s361, %s377
      %p379 = scmp.eq.s32.totalorder %s29, 0
      %p380 = por %p378, %p379
      %s381 = ssub.s32 %s31, %s38
      %p382 = scmp.eq.s32.totalorder %s381, 0
      %s384 = sadd.s32 %s383, 1
      %s385 = scalar_select %p382, %s383, %s384
      %p388 = pneg %p382
      %p389 = scmp.eq.s32.totalorder %s23, 3
      %p390 = por %p388, %p389
      %p391 = scmp.ne.s32.totalorder %s383, %s386
      %p392 = scmp.eq.s32.totalorder %s23, 0
      %p393 = por %p391, %p392
      %p394 = scmp.ne.s32.totalorder %s383, %s386
      %p395 = scmp.eq.s32.totalorder %s28, 3
      %p396 = por %p394, %p395
      %p397 = scmp.ne.s32.totalorder %s386, %s387
      %p398 = scmp.eq.s32.totalorder %s28, 0
      %p399 = por %p397, %p398
      %p400 = scmp.ne.s32.totalorder %s386, %s387
      %p401 = scmp.eq.s32.totalorder %s29, 3
      %p402 = por %p400, %p401
      %p404 = scmp.ne.s32.totalorder %s387, %s403
      %p405 = scmp.eq.s32.totalorder %s29, 0
      %p406 = por %p404, %p405
      %s407 = ssub.s32 %s30, %s42
      %p408 = scmp.eq.s32.totalorder %s407, 0
      %s410 = sadd.s32 %s409, 1
      %s411 = scalar_select %p408, %s409, %s410
      %p414 = pneg %p408
      %p415 = scmp.eq.s32.totalorder %s23, 3
      %p416 = por %p414, %p415
      %p417 = scmp.ne.s32.totalorder %s409, %s412
      %p418 = scmp.eq.s32.totalorder %s23, 0
      %p419 = por %p417, %p418
      %p420 = scmp.ne.s32.totalorder %s409, %s412
      %p421 = scmp.eq.s32.totalorder %s28, 3
      %p422 = por %p420, %p421
      %p423 = scmp.ne.s32.totalorder %s412, %s413
      %p424 = scmp.eq.s32.totalorder %s28, 0
      %p425 = por %p423, %p424
      %p426 = scmp.ne.s32.totalorder %s412, %s413
      %p427 = scmp.eq.s32.totalorder %s29, 3
      %p428 = por %p426, %p427
      %p430 = scmp.ne.s32.totalorder %s413, %s429
      %p431 = scmp.eq.s32.totalorder %s29, 0
      %p432 = por %p430, %p431
      %p433 = scmp.le.s32.totalorder 1, %s23
      %p434 = scmp.lt.s32.totalorder %s23, 5
      %p435 = pnand %p433, %p434
      %p436 = pneg %p435
      // Predicated region
      $region9: #{tpu_custom_call.1} parent=5 // pred_check
        _
      $region10: #{tpu_custom_call.1} parent=5 // pred_check_branch
        %438 = sbr.rel (%p435) target = $region12
      $region11: #{tpu_custom_call.1} parent=5 // pred_region
        %s439 = ssub.s32 %s23, 1
      $region12: #{tpu_custom_call.1} parent=5 // pred_fallthru
        _
      %p440 = scmp.lt.s32.totalorder %s23, 4
      // Predicated region
      $region13: #{tpu_custom_call.1} parent=5 // pred_check
        %p441 = pneg %p440
      $region14: #{tpu_custom_call.1} parent=5 // pred_check_branch
        %443 = sbr.rel (%p441) target = $region16
      $region15: #{tpu_custom_call.1} parent=5 // pred_region
        // Predicated region
        $region17: #{tpu_custom_call.1} parent=15 // pred_check
          %p444 = pneg %p55
        $region18: #{tpu_custom_call.1} parent=15 // pred_check_branch
          %446 = sbr.rel (%p444) target = $region20
        $region19: #{tpu_custom_call.1} parent=15 // pred_region
          %p447 = scmp.lt.s32.totalorder %s30, 1
          %s448 = scalar_select %p447, %s30, 1
          %s449 = smul.addr %s448, 8
          %s450 = scalar_lea.vmem %s0, %s449
        $region20: #{tpu_custom_call.1} parent=15 // pred_fallthru
          _
        // Predicated region
        $region21: #{tpu_custom_call.1} parent=15 // pred_check
          %p451 = pneg %p81
        $region22: #{tpu_custom_call.1} parent=15 // pred_check_branch
          %453 = sbr.rel (%p451) target = $region24
        $region23: #{tpu_custom_call.1} parent=15 // pred_region
          %p454 = scmp.lt.s32.totalorder %s30, 1
          %s455 = scalar_select %p454, %s30, 1
          %s456 = scalar_lea.vmem %s1, %s455
        $region24: #{tpu_custom_call.1} parent=15 // pred_fallthru
          _
        // Predicated region
        $region25: #{tpu_custom_call.1} parent=15 // pred_check
          %p457 = pneg %p107
        $region26: #{tpu_custom_call.1} parent=15 // pred_check_branch
          %459 = sbr.rel (%p457) target = $region28
        $region27: #{tpu_custom_call.1} parent=15 // pred_region
          %p460 = scmp.lt.s32.totalorder %s31, 1
          %s461 = scalar_select %p460, %s31, 1
          %s462 = smul.addr %s461, 24
          %s463 = smul.addr %s462, 4
          %s464 = scalar_lea.vmem %s2, %s463
        $region28: #{tpu_custom_call.1} parent=15 // pred_fallthru
          _
        // Predicated region
        $region29: #{tpu_custom_call.1} parent=15 // pred_check
          %p465 = pneg %p133
        $region30: #{tpu_custom_call.1} parent=15 // pred_check_branch
          %467 = sbr.rel (%p465) target = $region32
        $region31: #{tpu_custom_call.1} parent=15 // pred_region
          %p468 = scmp.lt.s32.totalorder %s31, 1
          %s469 = scalar_select %p468, %s31, 1
          %s470 = smul.addr %s469, 3
          %s471 = scalar_lea.vmem %s3, %s470
        $region32: #{tpu_custom_call.1} parent=15 // pred_fallthru
          _
        // Predicated region
        $region33: #{tpu_custom_call.1} parent=15 // pred_check
          %p472 = pneg %p159
        $region34: #{tpu_custom_call.1} parent=15 // pred_check_branch
          %474 = sbr.rel (%p472) target = $region36
        $region35: #{tpu_custom_call.1} parent=15 // pred_region
          %p475 = scmp.lt.s32.totalorder %s31, 1
          %s476 = scalar_select %p475, %s31, 1
          %s477 = smul.addr %s476, 16
          %s478 = smul.addr %s477, 4
          %s479 = scalar_lea.vmem %s4, %s478
        $region36: #{tpu_custom_call.1} parent=15 // pred_fallthru
          _
        // Predicated region
        $region37: #{tpu_custom_call.1} parent=15 // pred_check
          %p480 = pneg %p185
        $region38: #{tpu_custom_call.1} parent=15 // pred_check_branch
          %482 = sbr.rel (%p480) target = $region40
        $region39: #{tpu_custom_call.1} parent=15 // pred_region
          %p483 = scmp.lt.s32.totalorder %s31, 1
          %s484 = scalar_select %p483, %s31, 1
          %s485 = scalar_lea.vmem %s5, %s484
        $region40: #{tpu_custom_call.1} parent=15 // pred_fallthru
          _
        // Predicated region
        $region41: #{tpu_custom_call.1} parent=15 // pred_check
          %p486 = pneg %p211
        $region42: #{tpu_custom_call.1} parent=15 // pred_check_branch
          %488 = sbr.rel (%p486) target = $region44
        $region43: #{tpu_custom_call.1} parent=15 // pred_region
          %p489 = scmp.lt.s32.totalorder %s31, 1
          %s490 = scalar_select %p489, %s31, 1
          %s491 = scalar_lea.vmem %s6, %s490
        $region44: #{tpu_custom_call.1} parent=15 // pred_fallthru
          _
        // Predicated region
        $region45: #{tpu_custom_call.1} parent=15 // pred_check
          %p492 = pneg %p237
        $region46: #{tpu_custom_call.1} parent=15 // pred_check_branch
          %494 = sbr.rel (%p492) target = $region48
        $region47: #{tpu_custom_call.1} parent=15 // pred_region
          %p495 = scmp.lt.s32.totalorder %s31, 1
          %s496 = scalar_select %p495, %s31, 1
          %s497 = scalar_lea.vmem %s7, %s496
        $region48: #{tpu_custom_call.1} parent=15 // pred_fallthru
          _
        // Predicated region
        $region49: #{tpu_custom_call.1} parent=15 // pred_check
          %p498 = pneg %p263
        $region50: #{tpu_custom_call.1} parent=15 // pred_check_branch
          %500 = sbr.rel (%p498) target = $region52
        $region51: #{tpu_custom_call.1} parent=15 // pred_region
          %p501 = scmp.lt.s32.totalorder %s31, 1
          %s502 = scalar_select %p501, %s31, 1
          %s503 = smul.addr %s502, 8
          %s504 = smul.addr %s503, 4
          %s505 = scalar_lea.vmem %s8, %s504
        $region52: #{tpu_custom_call.1} parent=15 // pred_fallthru
          _
        // Predicated region
        $region53: #{tpu_custom_call.1} parent=15 // pred_check
          %p506 = pneg %p289
        $region54: #{tpu_custom_call.1} parent=15 // pred_check_branch
          %508 = sbr.rel (%p506) target = $region56
        $region55: #{tpu_custom_call.1} parent=15 // pred_region
          %p509 = scmp.lt.s32.totalorder %s31, 1
          %s510 = scalar_select %p509, %s31, 1
          %s511 = scalar_lea.vmem %s9, %s510
        $region56: #{tpu_custom_call.1} parent=15 // pred_fallthru
          _
        // Predicated region
        $region57: #{tpu_custom_call.1} parent=15 // pred_check
          %p512 = pneg %p315
        $region58: #{tpu_custom_call.1} parent=15 // pred_check_branch
          %514 = sbr.rel (%p512) target = $region60
        $region59: #{tpu_custom_call.1} parent=15 // pred_region
          %p515 = scmp.lt.s32.totalorder %s31, 1
          %s516 = scalar_select %p515, %s31, 1
          %s517 = smul.addr %s516, 16
          %s518 = smul.addr %s517, 4
          %s519 = scalar_lea.vmem %s10, %s518
        $region60: #{tpu_custom_call.1} parent=15 // pred_fallthru
          _
        // Predicated region
        $region61: #{tpu_custom_call.1} parent=15 // pred_check
          %p520 = pneg %p341
        $region62: #{tpu_custom_call.1} parent=15 // pred_check_branch
          %522 = sbr.rel (%p520) target = $region64
        $region63: #{tpu_custom_call.1} parent=15 // pred_region
          %p523 = scmp.lt.s32.totalorder %s31, 1
          %s524 = scalar_select %p523, %s31, 1
          %s525 = scalar_lea.vmem %s11, %s524
        $region64: #{tpu_custom_call.1} parent=15 // pred_fallthru
          _
        // Predicated region
        $region65: #{tpu_custom_call.1} parent=15 // pred_check
          %p526 = pneg %p367
        $region66: #{tpu_custom_call.1} parent=15 // pred_check_branch
          %528 = sbr.rel (%p526) target = $region68
        $region67: #{tpu_custom_call.1} parent=15 // pred_region
          %p529 = scmp.lt.s32.totalorder %s31, 1
          %s530 = scalar_select %p529, %s31, 1
          %s531 = scalar_lea.vmem %s12, %s530
        $region68: #{tpu_custom_call.1} parent=15 // pred_fallthru
          _
        // Predicated region
        $region69: #{tpu_custom_call.1} parent=15 // pred_check
          %p532 = pneg %p393
        $region70: #{tpu_custom_call.1} parent=15 // pred_check_branch
          %534 = sbr.rel (%p532) target = $region72
        $region71: #{tpu_custom_call.1} parent=15 // pred_region
          %p535 = scmp.lt.s32.totalorder %s31, 1
          %s536 = scalar_select %p535, %s31, 1
          %s537 = scalar_lea.vmem %s13, %s536
        $region72: #{tpu_custom_call.1} parent=15 // pred_fallthru
          _
      $region16: #{tpu_custom_call.1} parent=5 // pred_fallthru
        _
      %p538 = scmp.le.s32.totalorder 1, %s23
      %p539 = scmp.lt.s32.totalorder %s23, 5
      %p540 = pnand %p538, %p539
      %p541 = pneg %p540
      // Predicated region
      $region73: #{tpu_custom_call.1} parent=5 // pred_check
        _
      $region74: #{tpu_custom_call.1} parent=5 // pred_check_branch
        %543 = sbr.rel (%p540) target = $region76
      $region75: #{tpu_custom_call.1} parent=5 // pred_region
        %s544 = ssub.s32 %s23, 1
        %p545 = scmp.lt.s32.totalorder %s32, 1
        %s546 = scalar_select %p545, %s32, 1
        %s547 = smul.addr %s546, 8
        %s548 = scalar_lea.vmem %s0, %s547
        %p549 = pneg %p61
        %p550 = pneg %p58
        %p551 = scmp.lt.s32.totalorder %s32, 1
        %s552 = scalar_select %p551, %s32, 1
        %s553 = scalar_lea.vmem %s1, %s552
        %p554 = pneg %p87
        %p555 = pneg %p84
        %p556 = scmp.lt.s32.totalorder %s33, 1
        %s557 = scalar_select %p556, %s33, 1
        %s558 = smul.addr %s557, 24
        %s559 = smul.addr %s558, 4
        %s560 = scalar_lea.vmem %s2, %s559
        %p561 = pneg %p113
        %p562 = pneg %p110
        %p563 = scmp.lt.s32.totalorder %s33, 1
        %s564 = scalar_select %p563, %s33, 1
        %s565 = smul.addr %s564, 3
        %s566 = scalar_lea.vmem %s3, %s565
        %p567 = pneg %p139
        %p568 = pneg %p136
        %p569 = scmp.lt.s32.totalorder %s33, 1
        %s570 = scalar_select %p569, %s33, 1
        %s571 = smul.addr %s570, 16
        %s572 = smul.addr %s571, 4
        %s573 = scalar_lea.vmem %s4, %s572
        %p574 = pneg %p165
        %p575 = pneg %p162
        %p576 = scmp.lt.s32.totalorder %s33, 1
        %s577 = scalar_select %p576, %s33, 1
        %s578 = scalar_lea.vmem %s5, %s577
        %p579 = pneg %p191
        %p580 = pneg %p188
        %p581 = scmp.lt.s32.totalorder %s33, 1
        %s582 = scalar_select %p581, %s33, 1
        %s583 = scalar_lea.vmem %s6, %s582
        %p584 = pneg %p217
        %p585 = pneg %p214
        %p586 = scmp.lt.s32.totalorder %s33, 1
        %s587 = scalar_select %p586, %s33, 1
        %s588 = scalar_lea.vmem %s7, %s587
        %p589 = pneg %p243
        %p590 = pneg %p240
        %p591 = scmp.lt.s32.totalorder %s33, 1
        %s592 = scalar_select %p591, %s33, 1
        %s593 = smul.addr %s592, 8
        %s594 = smul.addr %s593, 4
        %s595 = scalar_lea.vmem %s8, %s594
        %p596 = pneg %p269
        %p597 = pneg %p266
        %p598 = scmp.lt.s32.totalorder %s33, 1
        %s599 = scalar_select %p598, %s33, 1
        %s600 = scalar_lea.vmem %s9, %s599
        %p601 = pneg %p295
        %p602 = pneg %p292
        %p603 = scmp.lt.s32.totalorder %s33, 1
        %s604 = scalar_select %p603, %s33, 1
        %s605 = smul.addr %s604, 16
        %s606 = smul.addr %s605, 4
        %s607 = scalar_lea.vmem %s10, %s606
        %p608 = pneg %p321
        %p609 = pneg %p318
        %p610 = scmp.lt.s32.totalorder %s33, 1
        %s611 = scalar_select %p610, %s33, 1
        %s612 = scalar_lea.vmem %s11, %s611
        %p613 = pneg %p347
        %p614 = pneg %p344
        %p615 = scmp.lt.s32.totalorder %s33, 1
        %s616 = scalar_select %p615, %s33, 1
        %s617 = scalar_lea.vmem %s12, %s616
        %p618 = pneg %p373
        %p619 = pneg %p370
        %p620 = scmp.lt.s32.totalorder %s33, 1
        %s621 = scalar_select %p620, %s33, 1
        %s622 = scalar_lea.vmem %s13, %s621
        %p623 = pneg %p399
        %p624 = pneg %p396
        %p625 = pneg %p425
        %p626 = pneg %p422
        %s627 = sand.u32 %s412, 1
        %s628 = scalar_lea.sflag [#allocation3], %s627
        %s629 = sand.u32 %s412, 1
        %s630 = smul.addr %s629, 8
        %s631 = scalar_lea.vmem [#allocation2], %s630
        %p632 = scmp.lt.s32.totalorder %s32, 1
        %s633 = scalar_select %p632, %s32, 1
        %s634 = smul.addr %s633, 8
        %s635 = scalar_lea.vmem %s0, %s634
        %p636 = scmp.lt.s32.totalorder %s32, 1
        %s637 = scalar_select %p636, %s32, 1
        %s638 = scalar_lea.vmem %s1, %s637
        %p639 = scmp.lt.s32.totalorder %s33, 1
        %s640 = scalar_select %p639, %s33, 1
        %s641 = smul.addr %s640, 24
        %s642 = smul.addr %s641, 4
        %s643 = scalar_lea.vmem %s2, %s642
        %p644 = scmp.lt.s32.totalorder %s33, 1
        %s645 = scalar_select %p644, %s33, 1
        %s646 = smul.addr %s645, 3
        %s647 = scalar_lea.vmem %s3, %s646
        %p648 = scmp.lt.s32.totalorder %s33, 1
        %s649 = scalar_select %p648, %s33, 1
        %s650 = smul.addr %s649, 16
        %s651 = smul.addr %s650, 4
        %s652 = scalar_lea.vmem %s4, %s651
        %p653 = scmp.lt.s32.totalorder %s33, 1
        %s654 = scalar_select %p653, %s33, 1
        %s655 = scalar_lea.vmem %s5, %s654
        %p656 = scmp.lt.s32.totalorder %s33, 1
        %s657 = scalar_select %p656, %s33, 1
        %s658 = scalar_lea.vmem %s6, %s657
        %p659 = scmp.lt.s32.totalorder %s33, 1
        %s660 = scalar_select %p659, %s33, 1
        %s661 = scalar_lea.vmem %s7, %s660
        %p662 = scmp.lt.s32.totalorder %s33, 1
        %s663 = scalar_select %p662, %s33, 1
        %s664 = smul.addr %s663, 8
        %s665 = smul.addr %s664, 4
        %s666 = scalar_lea.vmem %s8, %s665
        %p667 = scmp.lt.s32.totalorder %s33, 1
        %s668 = scalar_select %p667, %s33, 1
        %s669 = scalar_lea.vmem %s9, %s668
        %p670 = scmp.lt.s32.totalorder %s33, 1
        %s671 = scalar_select %p670, %s33, 1
        %s672 = smul.addr %s671, 16
        %s673 = smul.addr %s672, 4
        %s674 = scalar_lea.vmem %s10, %s673
        %p675 = scmp.lt.s32.totalorder %s33, 1
        %s676 = scalar_select %p675, %s33, 1
        %s677 = scalar_lea.vmem %s11, %s676
        %p678 = scmp.lt.s32.totalorder %s33, 1
        %s679 = scalar_select %p678, %s33, 1
        %s680 = scalar_lea.vmem %s12, %s679
        %p681 = scmp.lt.s32.totalorder %s33, 1
        %s682 = scalar_select %p681, %s33, 1
        %s683 = scalar_lea.vmem %s13, %s682
        %p685 = scmp.eq.s32.totalorder %s33, 0
        // Predicated region
        $region77: #{tpu_custom_call.1} parent=75 // pred_check
          %p686 = pneg %p685
        $region78: #{tpu_custom_call.1} parent=75 // pred_check_branch
          %688 = sbr.rel (%p686) target = $region80
        $region79: #{tpu_custom_call.1} parent=75 // pred_region
          %v689 = vld [vmem:[%s635] sm:$0xff]
          %vm690 = vcmask 523264
          %691 = vst.msk [vmem:[%s631] sm:$0xff] %vm690, %v689
        $region80: #{tpu_custom_call.1} parent=75 // pred_fallthru
          _
        %v692 = vld [vmem:[%s631] sm:$0xff]
        %v693 = vld [vmem:[%s638] sm:$0x1]
        %v694 = vpack.c.bf16 %v692, %v692
        %v695 = vld [vmem:[%s643] sm:$0xff]
        %v696 = vld [vmem:[%s643 + $0x8] sm:$0xf]
        %v697 = vld [vmem:[%s643 + $0xc] sm:$0xff]
        %v698 = vld [vmem:[%s643 + $0x14] sm:$0xf]
        %v699 = vld [vmem:[%s643 + $0x18] sm:$0xff]
        %v700 = vld [vmem:[%s643 + $0x20] sm:$0xf]
        %v701 = vld [vmem:[%s643 + $0x24] sm:$0xff]
        %v702 = vld [vmem:[%s643 + $0x2c] sm:$0xf]
        %v703 = vld [vmem:[%s643 + $0x30] sm:$0xff]
        %v704 = vld [vmem:[%s643 + $0x38] sm:$0xf]
        %v705 = vld [vmem:[%s643 + $0x3c] sm:$0xff]
        %v706 = vld [vmem:[%s643 + $0x44] sm:$0xf]
        %v707 = vld [vmem:[%s643 + $0x48] sm:$0xff]
        %v708 = vld [vmem:[%s643 + $0x50] sm:$0xf]
        %v709 = vld [vmem:[%s643 + $0x54] sm:$0xff]
        %v710 = vld [vmem:[%s643 + $0x5c] sm:$0xf]
        %v711 = vld [vmem:[%s647] sm:$0x7]
        %v713 = vlaneseq
        %v714 = vshrl.u32 %v713, 7
        %v715 = vsub.s32 0, %v714
        %v716 = vrot.slane %v711, %v715
        %v717 = vlaneseq
        %v718 = vshrl.u32 %v717, 7
        %v719 = vsub.s32 1, %v718
        %v720 = vrot.slane %v711, %v719
        %v721 = vlaneseq
        %v722 = vshrl.u32 %v721, 7
        %v723 = vsub.s32 2, %v722
        %v724 = vrot.slane %v711, %v723
        %v744 = vunpack.c.l.b16 %v695
        %v745 = vunpack.c.h.b16 %v695
        %v746 = vunpack.c.l.b16 %v696
        %v747 = vunpack.c.l.b16 %v697
        %v748 = vunpack.c.h.b16 %v697
        %v749 = vunpack.c.l.b16 %v698
        %v750 = vunpack.c.l.b16 %v699
        %v751 = vunpack.c.h.b16 %v699
        %v752 = vunpack.c.l.b16 %v700
        %v753 = vunpack.c.l.b16 %v701
        %v754 = vunpack.c.h.b16 %v701
        %v755 = vunpack.c.l.b16 %v702
        %v756 = vunpack.c.l.b16 %v703
        %v757 = vunpack.c.h.b16 %v703
        %v758 = vunpack.c.l.b16 %v704
        %v759 = vunpack.c.l.b16 %v705
        %v760 = vunpack.c.h.b16 %v705
        %v761 = vunpack.c.l.b16 %v706
        %v762 = vunpack.c.l.b16 %v707
        %v763 = vunpack.c.h.b16 %v707
        %v764 = vunpack.c.l.b16 %v708
        %v765 = vunpack.c.l.b16 %v709
        %v766 = vunpack.c.h.b16 %v709
        %v767 = vunpack.c.l.b16 %v710
        %v768 = vpack.c.b16 %v747, %v744
        %v769 = vpack.c.b16 %v748, %v745
        %v770 = vpack.c.b16 %v749, %v746
        %v771 = vpack.c.b16 %v753, %v750
        %v772 = vpack.c.b16 %v754, %v751
        %v773 = vpack.c.b16 %v755, %v752
        %v774 = vpack.c.b16 %v759, %v756
        %v775 = vpack.c.b16 %v760, %v757
        %v776 = vpack.c.b16 %v761, %v758
        %v777 = vpack.c.b16 %v765, %v762
        %v778 = vpack.c.b16 %v766, %v763
        %v779 = vpack.c.b16 %v767, %v764
        %vm792 = vcmask 523264
        %v794 = vsel %vm792, %v694, 0
        %796 = vmatprep.subr.bf16.mxu0 %v769
        %797 = vmatpush1.bf16.msra.mxu0 %v768
        %798 = vmatprep.subr.bf16.mxu0 %v772
        %799 = vmatpush1.bf16.msra.mxu0 %v771
        %800 = vmatprep.subr.bf16.mxu0 %v775
        %801 = vmatpush1.bf16.msra.mxu0 %v774
        %802 = vmatprep.subr.bf16.mxu0 %v778
        %803 = vmatpush1.bf16.msra.mxu0 %v777
        %804 = vmatprep.subr.bf16.mxu0 0
        %805 = vmatpush1.bf16.msra.mxu0 0
        %806 = vmatprep.subr.bf16.mxu0 0
        %807 = vmatpush1.bf16.msra.mxu0 0
        %808 = vmatprep.subr.bf16.mxu0 0
        %809 = vmatpush1.bf16.msra.mxu0 0
        %810 = vmatprep.subr.bf16.mxu0 0
        %811 = vmatpush1.bf16.msra.mxu0 0
        %812 = vmatprep.subr.bf16.mxu0 0
        %813 = vmatpush1.bf16.msra.mxu0 0
        %814 = vmatprep.subr.bf16.mxu0 0
        %815 = vmatpush1.bf16.msra.mxu0 0
        %816 = vmatprep.subr.bf16.mxu0 0
        %817 = vmatpush1.bf16.msra.mxu0 0
        %818 = vmatprep.subr.bf16.mxu0 0
        %819 = vmatpush1.bf16.msra.mxu0 0
        %820 = vmatprep.subr.bf16.mxu0 0
        %821 = vmatpush1.bf16.msra.mxu0 0
        %822 = vmatprep.subr.bf16.mxu0 0
        %823 = vmatpush1.bf16.msra.mxu0 0
        %824 = vmatprep.subr.bf16.mxu0 0
        %825 = vmatpush1.bf16.msra.mxu0 0
        %826 = vmatprep.subr.bf16.mxu0 0
        %827 = vmatpush1.bf16.msra.mxu0 0
        %828 = vmatprep.mubr.bf16.mxu0 0
        %829 = vmatmul.mubr.bf16.gmra.mrb[0].mxu0 %v794
        %v830 = vpop.f32.mrb[0].mxu0
        %v831 = vadd.f32 %v716, %v830
        %v832 = vpop.f32.mrb[0].mxu0
        %v833 = vadd.f32 %v720, %v832
        %v834 = vpop.f32.mrb[0].mxu0
        %v835 = vpop.f32.mrb[0].mxu0
        %836 = vdwg.mxu0
        %837 = vmatprep.subr.bf16.mxu0 0
        %838 = vmatpush1.bf16.msra.mxu0 %v770
        %839 = vmatprep.subr.bf16.mxu0 0
        %840 = vmatpush1.bf16.msra.mxu0 %v773
        %841 = vmatprep.subr.bf16.mxu0 0
        %842 = vmatpush1.bf16.msra.mxu0 %v776
        %843 = vmatprep.subr.bf16.mxu0 0
        %844 = vmatpush1.bf16.msra.mxu0 %v779
        %845 = vmatprep.subr.bf16.mxu0 0
        %846 = vmatpush1.bf16.msra.mxu0 0
        %847 = vmatprep.subr.bf16.mxu0 0
        %848 = vmatpush1.bf16.msra.mxu0 0
        %849 = vmatprep.subr.bf16.mxu0 0
        %850 = vmatpush1.bf16.msra.mxu0 0
        %851 = vmatprep.subr.bf16.mxu0 0
        %852 = vmatpush1.bf16.msra.mxu0 0
        %853 = vmatprep.subr.bf16.mxu0 0
        %854 = vmatpush1.bf16.msra.mxu0 0
        %855 = vmatprep.subr.bf16.mxu0 0
        %856 = vmatpush1.bf16.msra.mxu0 0
        %857 = vmatprep.subr.bf16.mxu0 0
        %858 = vmatpush1.bf16.msra.mxu0 0
        %859 = vmatprep.subr.bf16.mxu0 0
        %860 = vmatpush1.bf16.msra.mxu0 0
        %861 = vmatprep.subr.bf16.mxu0 0
        %862 = vmatpush1.bf16.msra.mxu0 0
        %863 = vmatprep.subr.bf16.mxu0 0
        %864 = vmatpush1.bf16.msra.mxu0 0
        %865 = vmatprep.subr.bf16.mxu0 0
        %866 = vmatpush1.bf16.msra.mxu0 0
        %867 = vmatprep.subr.bf16.mxu0 0
        %868 = vmatpush1.bf16.msra.mxu0 0
        %869 = vmatprep.mubr.bf16.mxu0 0
        %870 = vmatmul.mubr.bf16.gmra.mrb[0].mxu0 %v794
        %v871 = vpop.f32.mrb[0].mxu0
        %v872 = vadd.f32 %v724, %v871
        %v873 = vpop.f32.mrb[0].mxu0
        %v874 = vpop.f32.mrb[0].mxu0
        %v875 = vpop.f32.mrb[0].mxu0
        %876 = vdwg.mxu0
        %v877 = vpack.c.bf16 %v831, %v831
        %v878 = vpack.c.bf16 %v833, %v833
        %v879 = vpack.c.bf16 %v872, %v872
        %v881 = vsel %vm792, %v877, 0
        %v884 = vsel %vm792, %v878, 0
        %886 = vmatprep.subr.bf16.mxu0 0
        %887 = vmatpush1.bf16.xpose.msra.mxu0 %v884
        %888 = vmatprep.subr.bf16.mxu0 0
        %889 = vmatpush1.bf16.xpose.msra.mxu0 0
        %890 = vmatprep.subr.bf16.mxu0 0
        %891 = vmatpush1.bf16.xpose.msra.mxu0 0
        %892 = vmatprep.subr.bf16.mxu0 0
        %893 = vmatpush1.bf16.xpose.msra.mxu0 0
        %894 = vmatprep.subr.bf16.mxu0 0
        %895 = vmatpush1.bf16.xpose.msra.mxu0 0
        %896 = vmatprep.subr.bf16.mxu0 0
        %897 = vmatpush1.bf16.xpose.msra.mxu0 0
        %898 = vmatprep.subr.bf16.mxu0 0
        %899 = vmatpush1.bf16.xpose.msra.mxu0 0
        %900 = vmatprep.subr.bf16.mxu0 0
        %901 = vmatpush1.bf16.xpose.msra.mxu0 0
        %902 = vmatprep.subr.bf16.mxu0 0
        %903 = vmatpush1.bf16.xpose.msra.mxu0 0
        %904 = vmatprep.subr.bf16.mxu0 0
        %905 = vmatpush1.bf16.xpose.msra.mxu0 0
        %906 = vmatprep.subr.bf16.mxu0 0
        %907 = vmatpush1.bf16.xpose.msra.mxu0 0
        %908 = vmatprep.subr.bf16.mxu0 0
        %909 = vmatpush1.bf16.xpose.msra.mxu0 0
        %910 = vmatprep.subr.bf16.mxu0 0
        %911 = vmatpush1.bf16.xpose.msra.mxu0 0
        %912 = vmatprep.subr.bf16.mxu0 0
        %913 = vmatpush1.bf16.xpose.msra.mxu0 0
        %914 = vmatprep.subr.bf16.mxu0 0
        %915 = vmatpush1.bf16.xpose.msra.mxu0 0
        %916 = vmatprep.subr.bf16.mxu0 0
        %917 = vmatpush1.bf16.xpose.msra.mxu0 0
        %918 = vmatprep.mubr.bf16.mxu0 0
        %919 = vmatmul.mubr.bf16.gmra.mrb[0].mxu0 %v881
        %v920 = vpop.f32.mrb[0].mxu0
        %v921 = vadd.f32 0.0, %v920
        %v922 = vpop.f32.mrb[0].mxu0
        %v923 = vpop.f32.mrb[0].mxu0
        %v924 = vpop.f32.mrb[0].mxu0
        %925 = vdwg.mxu0
        %v926 = vmul.f32 %v921, 0.125
        %v928 = vlaneseq
        %v929 = vshrl.u32 %v928, 7
        %v930 = vsub.s32 0, %v929
        %v931 = vrot.slane %v693, %v930
        %v933 = vadd.f32 %v926, %v931
        %vm934 = vcmask 64512
        %v935 = vsel %vm934, %v933, -inf
        %936 = vmax.xlane.f32.xlu0 %v935
        %v937 = vpop.xlane.xlu0 %936
        %v938 = vsub.f32 %v933, %v937
        %v939 = vmul.f32 %v938, 1.442695
        %v940 = vpow.pop %v939
        %v941 = vsel %vm934, %v940, 0.0
        %942 = vadd.xlane.f32.xlu0 %v941
        %v943 = vpop.xlane.xlu0 %942
        %v944 = vrcp.pop %v943
        %v945 = vmul.f32 %v940, %v944
        %v946 = vpack.c.bf16 %v945, %v945
        %v948 = vsel %vm934, %v946, 0
        %vm950 = vcmask 1043456
        %v952 = vsel %vm950, %v879, 0
        %954 = vmatprep.subr.bf16.mxu0 0
        %955 = vmatpush1.bf16.msra.mxu0 %v952
        %956 = vmatprep.subr.bf16.mxu0 0
        %957 = vmatpush1.bf16.msra.mxu0 0
        %958 = vmatprep.subr.bf16.mxu0 0
        %959 = vmatpush1.bf16.msra.mxu0 0
        %960 = vmatprep.subr.bf16.mxu0 0
        %961 = vmatpush1.bf16.msra.mxu0 0
        %962 = vmatprep.subr.bf16.mxu0 0
        %963 = vmatpush1.bf16.msra.mxu0 0
        %964 = vmatprep.subr.bf16.mxu0 0
        %965 = vmatpush1.bf16.msra.mxu0 0
        %966 = vmatprep.subr.bf16.mxu0 0
        %967 = vmatpush1.bf16.msra.mxu0 0
        %968 = vmatprep.subr.bf16.mxu0 0
        %969 = vmatpush1.bf16.msra.mxu0 0
        %970 = vmatprep.subr.bf16.mxu0 0
        %971 = vmatpush1.bf16.msra.mxu0 0
        %972 = vmatprep.subr.bf16.mxu0 0
        %973 = vmatpush1.bf16.msra.mxu0 0
        %974 = vmatprep.subr.bf16.mxu0 0
        %975 = vmatpush1.bf16.msra.mxu0 0
        %976 = vmatprep.subr.bf16.mxu0 0
        %977 = vmatpush1.bf16.msra.mxu0 0
        %978 = vmatprep.subr.bf16.mxu0 0
        %979 = vmatpush1.bf16.msra.mxu0 0
        %980 = vmatprep.subr.bf16.mxu0 0
        %981 = vmatpush1.bf16.msra.mxu0 0
        %982 = vmatprep.subr.bf16.mxu0 0
        %983 = vmatpush1.bf16.msra.mxu0 0
        %984 = vmatprep.subr.bf16.mxu0 0
        %985 = vmatpush1.bf16.msra.mxu0 0
        %986 = vmatprep.mubr.bf16.mxu0 0
        %987 = vmatmul.mubr.bf16.gmra.mrb[0].mxu0 %v948
        %v988 = vpop.f32.mrb[0].mxu0
        %v989 = vadd.f32 0.0, %v988
        %v990 = vpop.f32.mrb[0].mxu0
        %v991 = vpop.f32.mrb[0].mxu0
        %v992 = vpop.f32.mrb[0].mxu0
        %993 = vdwg.mxu0
        %995 = vrot.lane.b32.xlu0 %v877, 64
        %v996 = vpop.permute.xlu0 %995
        %998 = vrot.lane.b32.xlu0 %v878, 64
        %v999 = vpop.permute.xlu0 %998
        %v1001 = vsel %vm792, %v996, 0
        %v1004 = vsel %vm792, %v999, 0
        %1006 = vmatprep.subr.bf16.mxu0 0
        %1007 = vmatpush1.bf16.xpose.msra.mxu0 %v1004
        %1008 = vmatprep.subr.bf16.mxu0 0
        %1009 = vmatpush1.bf16.xpose.msra.mxu0 0
        %1010 = vmatprep.subr.bf16.mxu0 0
        %1011 = vmatpush1.bf16.xpose.msra.mxu0 0
        %1012 = vmatprep.subr.bf16.mxu0 0
        %1013 = vmatpush1.bf16.xpose.msra.mxu0 0
        %1014 = vmatprep.subr.bf16.mxu0 0
        %1015 = vmatpush1.bf16.xpose.msra.mxu0 0
        %1016 = vmatprep.subr.bf16.mxu0 0
        %1017 = vmatpush1.bf16.xpose.msra.mxu0 0
        %1018 = vmatprep.subr.bf16.mxu0 0
        %1019 = vmatpush1.bf16.xpose.msra.mxu0 0
        %1020 = vmatprep.subr.bf16.mxu0 0
        %1021 = vmatpush1.bf16.xpose.msra.mxu0 0
        %1022 = vmatprep.subr.bf16.mxu0 0
        %1023 = vmatpush1.bf16.xpose.msra.mxu0 0
        %1024 = vmatprep.subr.bf16.mxu0 0
        %1025 = vmatpush1.bf16.xpose.msra.mxu0 0
        %1026 = vmatprep.subr.bf16.mxu0 0
        %1027 = vmatpush1.bf16.xpose.msra.mxu0 0
        %1028 = vmatprep.subr.bf16.mxu0 0
        %1029 = vmatpush1.bf16.xpose.msra.mxu0 0
        %1030 = vmatprep.subr.bf16.mxu0 0
        %1031 = vmatpush1.bf16.xpose.msra.mxu0 0
        %1032 = vmatprep.subr.bf16.mxu0 0
        %1033 = vmatpush1.bf16.xpose.msra.mxu0 0
        %1034 = vmatprep.subr.bf16.mxu0 0
        %1035 = vmatpush1.bf16.xpose.msra.mxu0 0
        %1036 = vmatprep.subr.bf16.mxu0 0
        %1037 = vmatpush1.bf16.xpose.msra.mxu0 0
        %1038 = vmatprep.mubr.bf16.mxu0 0
        %1039 = vmatmul.mubr.bf16.gmra.mrb[0].mxu0 %v1001
        %v1040 = vpop.f32.mrb[0].mxu0
        %v1041 = vadd.f32 0.0, %v1040
        %v1042 = vpop.f32.mrb[0].mxu0
        %v1043 = vpop.f32.mrb[0].mxu0
        %v1044 = vpop.f32.mrb[0].mxu0
        %1045 = vdwg.mxu0
        %v1046 = vmul.f32 %v1041, 0.125
        %v1047 = vadd.f32 %v1046, %v931
        %v1048 = vsel %vm934, %v1047, -inf
        %1049 = vmax.xlane.f32.xlu0 %v1048
        %v1050 = vpop.xlane.xlu0 %1049
        %v1051 = vsub.f32 %v1047, %v1050
        %v1052 = vmul.f32 %v1051, 1.442695
        %v1053 = vpow.pop %v1052
        %v1054 = vsel %vm934, %v1053, 0.0
        %1055 = vadd.xlane.f32.xlu0 %v1054
        %v1056 = vpop.xlane.xlu0 %1055
        %v1057 = vrcp.pop %v1056
        %v1058 = vmul.f32 %v1053, %v1057
        %v1059 = vpack.c.bf16 %v1058, %v1058
        %1061 = vrot.lane.b32.xlu0 %v879, 64
        %v1062 = vpop.permute.xlu0 %1061
        %v1064 = vsel %vm934, %v1059, 0
        %v1067 = vsel %vm950, %v1062, 0
        %1069 = vmatprep.subr.bf16.mxu0 0
        %1070 = vmatpush1.bf16.msra.mxu0 %v1067
        %1071 = vmatprep.subr.bf16.mxu0 0
        %1072 = vmatpush1.bf16.msra.mxu0 0
        %1073 = vmatprep.subr.bf16.mxu0 0
        %1074 = vmatpush1.bf16.msra.mxu0 0
        %1075 = vmatprep.subr.bf16.mxu0 0
        %1076 = vmatpush1.bf16.msra.mxu0 0
        %1077 = vmatprep.subr.bf16.mxu0 0
        %1078 = vmatpush1.bf16.msra.mxu0 0
        %1079 = vmatprep.subr.bf16.mxu0 0
        %1080 = vmatpush1.bf16.msra.mxu0 0
        %1081 = vmatprep.subr.bf16.mxu0 0
        %1082 = vmatpush1.bf16.msra.mxu0 0
        %1083 = vmatprep.subr.bf16.mxu0 0
        %1084 = vmatpush1.bf16.msra.mxu0 0
        %1085 = vmatprep.subr.bf16.mxu0 0
        %1086 = vmatpush1.bf16.msra.mxu0 0
        %1087 = vmatprep.subr.bf16.mxu0 0
        %1088 = vmatpush1.bf16.msra.mxu0 0
        %1089 = vmatprep.subr.bf16.mxu0 0
        %1090 = vmatpush1.bf16.msra.mxu0 0
        %1091 = vmatprep.subr.bf16.mxu0 0
        %1092 = vmatpush1.bf16.msra.mxu0 0
        %1093 = vmatprep.subr.bf16.mxu0 0
        %1094 = vmatpush1.bf16.msra.mxu0 0
        %1095 = vmatprep.subr.bf16.mxu0 0
        %1096 = vmatpush1.bf16.msra.mxu0 0
        %1097 = vmatprep.subr.bf16.mxu0 0
        %1098 = vmatpush1.bf16.msra.mxu0 0
        %1099 = vmatprep.subr.bf16.mxu0 0
        %1100 = vmatpush1.bf16.msra.mxu0 0
        %1101 = vmatprep.mubr.bf16.mxu0 0
        %1102 = vmatmul.mubr.bf16.gmra.mrb[0].mxu0 %v1064
        %v1103 = vpop.f32.mrb[0].mxu0
        %v1104 = vadd.f32 0.0, %v1103
        %v1105 = vpop.f32.mrb[0].mxu0
        %v1106 = vpop.f32.mrb[0].mxu0
        %v1107 = vpop.f32.mrb[0].mxu0
        %1108 = vdwg.mxu0
        %1110 = vrot.lane.b32.xlu0 %v1104, 64
        %v1111 = vpop.permute.xlu0 %1110
        %v1113 = vsel %vm792, %v989, %v1111
        %v1114 = vpack.c.bf16 %v1113, %v1113
        %v1115 = vld [vmem:[%s652] sm:$0xf]
        %v1116 = vld [vmem:[%s652 + $0x4] sm:$0xf]
        %v1117 = vld [vmem:[%s652 + $0x8] sm:$0xf]
        %v1118 = vld [vmem:[%s652 + $0xc] sm:$0xf]
        %v1119 = vld [vmem:[%s652 + $0x10] sm:$0xf]
        %v1120 = vld [vmem:[%s652 + $0x14] sm:$0xf]
        %v1121 = vld [vmem:[%s652 + $0x18] sm:$0xf]
        %v1122 = vld [vmem:[%s652 + $0x1c] sm:$0xf]
        %v1123 = vld [vmem:[%s652 + $0x20] sm:$0xf]
        %v1124 = vld [vmem:[%s652 + $0x24] sm:$0xf]
        %v1125 = vld [vmem:[%s652 + $0x28] sm:$0xf]
        %v1126 = vld [vmem:[%s652 + $0x2c] sm:$0xf]
        %v1127 = vld [vmem:[%s652 + $0x30] sm:$0xf]
        %v1128 = vld [vmem:[%s652 + $0x34] sm:$0xf]
        %v1129 = vld [vmem:[%s652 + $0x38] sm:$0xf]
        %v1130 = vld [vmem:[%s652 + $0x3c] sm:$0xf]
        %v1131 = vld [vmem:[%s655] sm:$0x1]
        %v1133 = vlaneseq
        %v1134 = vshrl.u32 %v1133, 7
        %v1135 = vsub.s32 0, %v1134
        %v1136 = vrot.slane %v1131, %v1135
        %v1154 = vunpack.c.l.b16 %v1115
        %v1155 = vunpack.c.l.b16 %v1116
        %v1156 = vunpack.c.l.b16 %v1117
        %v1157 = vunpack.c.l.b16 %v1118
        %v1158 = vunpack.c.l.b16 %v1119
        %v1159 = vunpack.c.l.b16 %v1120
        %v1160 = vunpack.c.l.b16 %v1121
        %v1161 = vunpack.c.l.b16 %v1122
        %v1162 = vunpack.c.l.b16 %v1123
        %v1163 = vunpack.c.l.b16 %v1124
        %v1164 = vunpack.c.l.b16 %v1125
        %v1165 = vunpack.c.l.b16 %v1126
        %v1166 = vunpack.c.l.b16 %v1127
        %v1167 = vunpack.c.l.b16 %v1128
        %v1168 = vunpack.c.l.b16 %v1129
        %v1169 = vunpack.c.l.b16 %v1130
        %v1170 = vpack.c.b16 %v1155, %v1154
        %v1171 = vpack.c.b16 %v1157, %v1156
        %v1172 = vpack.c.b16 %v1159, %v1158
        %v1173 = vpack.c.b16 %v1161, %v1160
        %v1174 = vpack.c.b16 %v1163, %v1162
        %v1175 = vpack.c.b16 %v1165, %v1164
        %v1176 = vpack.c.b16 %v1167, %v1166
        %v1177 = vpack.c.b16 %v1169, %v1168
        %1186 = vmatprep.subr.bf16.mxu0 0
        %1187 = vmatpush1.bf16.msra.mxu0 %v1170
        %1188 = vmatprep.subr.bf16.mxu0 0
        %1189 = vmatpush1.bf16.msra.mxu0 %v1171
        %1190 = vmatprep.subr.bf16.mxu0 0
        %1191 = vmatpush1.bf16.msra.mxu0 %v1172
        %1192 = vmatprep.subr.bf16.mxu0 0
        %1193 = vmatpush1.bf16.msra.mxu0 %v1173
        %1194 = vmatprep.subr.bf16.mxu0 0
        %1195 = vmatpush1.bf16.msra.mxu0 %v1174
        %1196 = vmatprep.subr.bf16.mxu0 0
        %1197 = vmatpush1.bf16.msra.mxu0 %v1175
        %1198 = vmatprep.subr.bf16.mxu0 0
        %1199 = vmatpush1.bf16.msra.mxu0 %v1176
        %1200 = vmatprep.subr.bf16.mxu0 0
        %1201 = vmatpush1.bf16.msra.mxu0 %v1177
        %1202 = vmatprep.subr.bf16.mxu0 0
        %1203 = vmatpush1.bf16.msra.mxu0 0
        %1204 = vmatprep.subr.bf16.mxu0 0
        %1205 = vmatpush1.bf16.msra.mxu0 0
        %1206 = vmatprep.subr.bf16.mxu0 0
        %1207 = vmatpush1.bf16.msra.mxu0 0
        %1208 = vmatprep.subr.bf16.mxu0 0
        %1209 = vmatpush1.bf16.msra.mxu0 0
        %1210 = vmatprep.subr.bf16.mxu0 0
        %1211 = vmatpush1.bf16.msra.mxu0 0
        %1212 = vmatprep.subr.bf16.mxu0 0
        %1213 = vmatpush1.bf16.msra.mxu0 0
        %1214 = vmatprep.subr.bf16.mxu0 0
        %1215 = vmatpush1.bf16.msra.mxu0 0
        %1216 = vmatprep.subr.bf16.mxu0 0
        %1217 = vmatpush1.bf16.msra.mxu0 0
        %1218 = vmatprep.mubr.bf16.mxu0 0
        %1219 = vmatmul.mubr.bf16.gmra.mrb[0].mxu0 %v1114
        %v1220 = vpop.f32.mrb[0].mxu0
        %v1221 = vadd.f32 %v1136, %v1220
        %v1222 = vpop.f32.mrb[0].mxu0
        %v1223 = vpop.f32.mrb[0].mxu0
        %v1224 = vpop.f32.mrb[0].mxu0
        %1225 = vdwg.mxu0
        %v1226 = vadd.f32 %v692, %v1221
        %v1227 = vld [vmem:[%s658] sm:$0x1]
        %v1228 = vld [vmem:[%s661] sm:$0x1]
        %v1229 = vsel %vm792, %v1226, 0.0
        %1230 = vadd.xlane.f32.xlu0 %v1229
        %v1231 = vpop.xlane.xlu0 %1230
        %v1232 = vrcp.pop 64.0
        %v1233 = vmul.f32 %v1231, %v1232
        %v1234 = vsub.f32 %v1226, %v1233
        %v1235 = vmul.f32 %v1234, %v1234
        %v1236 = vsel %vm792, %v1235, 0.0
        %1237 = vadd.xlane.f32.xlu0 %v1236
        %v1238 = vpop.xlane.xlu0 %1237
        %v1239 = vmul.f32 %v1238, %v1232
        %v1240 = vadd.f32 %v1239, 1e-06
        %v1241 = vrsqrt.pop %v1240
        %v1242 = vmul.f32 %v1234, %v1241
        %v1244 = vlaneseq
        %v1245 = vshrl.u32 %v1244, 7
        %v1246 = vsub.s32 0, %v1245
        %v1247 = vrot.slane %v1227, %v1246
        %v1249 = vmul.f32 %v1242, %v1247
        %v1251 = vlaneseq
        %v1252 = vshrl.u32 %v1251, 7
        %v1253 = vsub.s32 0, %v1252
        %v1254 = vrot.slane %v1228, %v1253
        %v1256 = vadd.f32 %v1249, %v1254
        %v1257 = vpack.c.bf16 %v1256, %v1256
        %v1258 = vld [vmem:[%s666] sm:$0xf]
        %v1259 = vld [vmem:[%s666 + $0x4] sm:$0xf]
        %v1260 = vld [vmem:[%s666 + $0x8] sm:$0xf]
        %v1261 = vld [vmem:[%s666 + $0xc] sm:$0xf]
        %v1262 = vld [vmem:[%s666 + $0x10] sm:$0xf]
        %v1263 = vld [vmem:[%s666 + $0x14] sm:$0xf]
        %v1264 = vld [vmem:[%s666 + $0x18] sm:$0xf]
        %v1265 = vld [vmem:[%s666 + $0x1c] sm:$0xf]
        %v1266 = vld [vmem:[%s669] sm:$0x1]
        %v1268 = vlaneseq
        %v1269 = vshrl.u32 %v1268, 7
        %v1270 = vsub.s32 0, %v1269
        %v1271 = vrot.slane %v1266, %v1270
        %v1281 = vunpack.c.l.b16 %v1258
        %v1282 = vunpack.c.l.b16 %v1259
        %v1283 = vunpack.c.l.b16 %v1260
        %v1284 = vunpack.c.l.b16 %v1261
        %v1285 = vunpack.c.l.b16 %v1262
        %v1286 = vunpack.c.l.b16 %v1263
        %v1287 = vunpack.c.l.b16 %v1264
        %v1288 = vunpack.c.l.b16 %v1265
        %v1289 = vpack.c.b16 %v1282, %v1281
        %v1290 = vpack.c.b16 %v1284, %v1283
        %v1291 = vpack.c.b16 %v1286, %v1285
        %v1292 = vpack.c.b16 %v1288, %v1287
        %v1298 = vsel %vm792, %v1257, 0
        %1300 = vmatprep.subr.bf16.mxu0 0
        %1301 = vmatpush1.bf16.msra.mxu0 %v1289
        %1302 = vmatprep.subr.bf16.mxu0 0
        %1303 = vmatpush1.bf16.msra.mxu0 %v1290
        %1304 = vmatprep.subr.bf16.mxu0 0
        %1305 = vmatpush1.bf16.msra.mxu0 %v1291
        %1306 = vmatprep.subr.bf16.mxu0 0
        %1307 = vmatpush1.bf16.msra.mxu0 %v1292
        %1308 = vmatprep.subr.bf16.mxu0 0
        %1309 = vmatpush1.bf16.msra.mxu0 0
        %1310 = vmatprep.subr.bf16.mxu0 0
        %1311 = vmatpush1.bf16.msra.mxu0 0
        %1312 = vmatprep.subr.bf16.mxu0 0
        %1313 = vmatpush1.bf16.msra.mxu0 0
        %1314 = vmatprep.subr.bf16.mxu0 0
        %1315 = vmatpush1.bf16.msra.mxu0 0
        %1316 = vmatprep.subr.bf16.mxu0 0
        %1317 = vmatpush1.bf16.msra.mxu0 0
        %1318 = vmatprep.subr.bf16.mxu0 0
        %1319 = vmatpush1.bf16.msra.mxu0 0
        %1320 = vmatprep.subr.bf16.mxu0 0
        %1321 = vmatpush1.bf16.msra.mxu0 0
        %1322 = vmatprep.subr.bf16.mxu0 0
        %1323 = vmatpush1.bf16.msra.mxu0 0
        %1324 = vmatprep.subr.bf16.mxu0 0
        %1325 = vmatpush1.bf16.msra.mxu0 0
        %1326 = vmatprep.subr.bf16.mxu0 0
        %1327 = vmatpush1.bf16.msra.mxu0 0
        %1328 = vmatprep.subr.bf16.mxu0 0
        %1329 = vmatpush1.bf16.msra.mxu0 0
        %1330 = vmatprep.subr.bf16.mxu0 0
        %1331 = vmatpush1.bf16.msra.mxu0 0
        %1332 = vmatprep.mubr.bf16.mxu0 0
        %1333 = vmatmul.mubr.bf16.gmra.mrb[0].mxu0 %v1298
        %v1334 = vpop.f32.mrb[0].mxu0
        %v1335 = vadd.f32 %v1271, %v1334
        %v1336 = vpop.f32.mrb[0].mxu0
        %v1337 = vpop.f32.mrb[0].mxu0
        %v1338 = vpop.f32.mrb[0].mxu0
        %1339 = vdwg.mxu0
        %v1340 = vmax.f32 %v1335, 0.0
        %v1341 = vpack.c.bf16 %v1340, %v1340
        %v1342 = vld [vmem:[%s674] sm:$0xf]
        %v1343 = vld [vmem:[%s674 + $0x4] sm:$0xf]
        %v1344 = vld [vmem:[%s674 + $0x8] sm:$0xf]
        %v1345 = vld [vmem:[%s674 + $0xc] sm:$0xf]
        %v1346 = vld [vmem:[%s674 + $0x10] sm:$0xf]
        %v1347 = vld [vmem:[%s674 + $0x14] sm:$0xf]
        %v1348 = vld [vmem:[%s674 + $0x18] sm:$0xf]
        %v1349 = vld [vmem:[%s674 + $0x1c] sm:$0xf]
        %v1350 = vld [vmem:[%s674 + $0x20] sm:$0xf]
        %v1351 = vld [vmem:[%s674 + $0x24] sm:$0xf]
        %v1352 = vld [vmem:[%s674 + $0x28] sm:$0xf]
        %v1353 = vld [vmem:[%s674 + $0x2c] sm:$0xf]
        %v1354 = vld [vmem:[%s674 + $0x30] sm:$0xf]
        %v1355 = vld [vmem:[%s674 + $0x34] sm:$0xf]
        %v1356 = vld [vmem:[%s674 + $0x38] sm:$0xf]
        %v1357 = vld [vmem:[%s674 + $0x3c] sm:$0xf]
        %v1358 = vld [vmem:[%s677] sm:$0x1]
        %v1360 = vlaneseq
        %v1361 = vshrl.u32 %v1360, 7
        %v1362 = vsub.s32 0, %v1361
        %v1363 = vrot.slane %v1358, %v1362
        %v1381 = vunpack.c.l.b16 %v1342
        %v1382 = vunpack.c.l.b16 %v1343
        %v1383 = vunpack.c.l.b16 %v1344
        %v1384 = vunpack.c.l.b16 %v1345
        %v1385 = vunpack.c.l.b16 %v1346
        %v1386 = vunpack.c.l.b16 %v1347
        %v1387 = vunpack.c.l.b16 %v1348
        %v1388 = vunpack.c.l.b16 %v1349
        %v1389 = vunpack.c.l.b16 %v1350
        %v1390 = vunpack.c.l.b16 %v1351
        %v1391 = vunpack.c.l.b16 %v1352
        %v1392 = vunpack.c.l.b16 %v1353
        %v1393 = vunpack.c.l.b16 %v1354
        %v1394 = vunpack.c.l.b16 %v1355
        %v1395 = vunpack.c.l.b16 %v1356
        %v1396 = vunpack.c.l.b16 %v1357
        %v1397 = vpack.c.b16 %v1382, %v1381
        %v1398 = vpack.c.b16 %v1384, %v1383
        %v1399 = vpack.c.b16 %v1386, %v1385
        %v1400 = vpack.c.b16 %v1388, %v1387
        %v1401 = vpack.c.b16 %v1390, %v1389
        %v1402 = vpack.c.b16 %v1392, %v1391
        %v1403 = vpack.c.b16 %v1394, %v1393
        %v1404 = vpack.c.b16 %v1396, %v1395
        %1413 = vmatprep.subr.bf16.mxu0 0
        %1414 = vmatpush1.bf16.msra.mxu0 %v1397
        %1415 = vmatprep.subr.bf16.mxu0 0
        %1416 = vmatpush1.bf16.msra.mxu0 %v1398
        %1417 = vmatprep.subr.bf16.mxu0 0
        %1418 = vmatpush1.bf16.msra.mxu0 %v1399
        %1419 = vmatprep.subr.bf16.mxu0 0
        %1420 = vmatpush1.bf16.msra.mxu0 %v1400
        %1421 = vmatprep.subr.bf16.mxu0 0
        %1422 = vmatpush1.bf16.msra.mxu0 %v1401
        %1423 = vmatprep.subr.bf16.mxu0 0
        %1424 = vmatpush1.bf16.msra.mxu0 %v1402
        %1425 = vmatprep.subr.bf16.mxu0 0
        %1426 = vmatpush1.bf16.msra.mxu0 %v1403
        %1427 = vmatprep.subr.bf16.mxu0 0
        %1428 = vmatpush1.bf16.msra.mxu0 %v1404
        %1429 = vmatprep.subr.bf16.mxu0 0
        %1430 = vmatpush1.bf16.msra.mxu0 0
        %1431 = vmatprep.subr.bf16.mxu0 0
        %1432 = vmatpush1.bf16.msra.mxu0 0
        %1433 = vmatprep.subr.bf16.mxu0 0
        %1434 = vmatpush1.bf16.msra.mxu0 0
        %1435 = vmatprep.subr.bf16.mxu0 0
        %1436 = vmatpush1.bf16.msra.mxu0 0
        %1437 = vmatprep.subr.bf16.mxu0 0
        %1438 = vmatpush1.bf16.msra.mxu0 0
        %1439 = vmatprep.subr.bf16.mxu0 0
        %1440 = vmatpush1.bf16.msra.mxu0 0
        %1441 = vmatprep.subr.bf16.mxu0 0
        %1442 = vmatpush1.bf16.msra.mxu0 0
        %1443 = vmatprep.subr.bf16.mxu0 0
        %1444 = vmatpush1.bf16.msra.mxu0 0
        %1445 = vmatprep.mubr.bf16.mxu0 0
        %1446 = vmatmul.mubr.bf16.gmra.mrb[0].mxu0 %v1341
        %v1447 = vpop.f32.mrb[0].mxu0
        %v1448 = vadd.f32 %v1363, %v1447
        %v1449 = vpop.f32.mrb[0].mxu0
        %v1450 = vpop.f32.mrb[0].mxu0
        %v1451 = vpop.f32.mrb[0].mxu0
        %1452 = vdwg.mxu0
        %v1453 = vadd.f32 %v1256, %v1448
        %v1454 = vld [vmem:[%s680] sm:$0x1]
        %v1455 = vld [vmem:[%s683] sm:$0x1]
        %v1456 = vsel %vm792, %v1453, 0.0
        %1457 = vadd.xlane.f32.xlu0 %v1456
        %v1458 = vpop.xlane.xlu0 %1457
        %v1459 = vmul.f32 %v1458, %v1232
        %v1460 = vsub.f32 %v1453, %v1459
        %v1461 = vmul.f32 %v1460, %v1460
        %v1462 = vsel %vm792, %v1461, 0.0
        %1463 = vadd.xlane.f32.xlu0 %v1462
        %v1464 = vpop.xlane.xlu0 %1463
        %v1465 = vmul.f32 %v1464, %v1232
        %v1466 = vadd.f32 %v1465, 1e-06
        %v1467 = vrsqrt.pop %v1466
        %v1468 = vmul.f32 %v1460, %v1467
        %v1470 = vlaneseq
        %v1471 = vshrl.u32 %v1470, 7
        %v1472 = vsub.s32 0, %v1471
        %v1473 = vrot.slane %v1454, %v1472
        %v1475 = vmul.f32 %v1468, %v1473
        %v1477 = vlaneseq
        %v1478 = vshrl.u32 %v1477, 7
        %v1479 = vsub.s32 0, %v1478
        %v1480 = vrot.slane %v1455, %v1479
        %v1482 = vadd.f32 %v1475, %v1480
        %1483 = vst.msk [vmem:[%s631] sm:$0xff] %vm792, %v1482
        %s1484 = sand.u32 %s412, 1
        %s1485 = scalar_lea.sflag [#allocation3], %s1484
        %s1486 = sand.u32 %s412, 1
        %s1487 = smul.addr %s1486, 8
        %s1488 = scalar_lea.vmem [#allocation2], %s1487
        // Predicated region
        $region81: #{tpu_custom_call.1} parent=75 // pred_check
          %p1489 = pneg %p422
        $region82: #{tpu_custom_call.1} parent=75 // pred_check_branch
          %1491 = sbr.rel (%p1489) target = $region84
        $region83: #{tpu_custom_call.1} parent=75 // pred_region
          %s1493 = ssub.s32 128, 128
          %1494 = vsyncadd %s1485, %s1493
          %s1495 = smul.addr %s32, 128
          %s1496 = scalar_lea.hbm %s14, %s1495
          %s1498 = sshll.u32 %s1488, 4
          %s1499 = int_to_ptr.vmem [resolvable:$true] %s1498
          %1501 = dma.vmem_to_hbm [thread:$0]  %s1499, 128, %s1496, %s1485
        $region84: #{tpu_custom_call.1} parent=75 // pred_fallthru
          _
      $region76: #{tpu_custom_call.1} parent=5 // pred_fallthru
        _
      %p1502 = scmp.le.s32.totalorder 2, %s23
      // Predicated region
      $region85: #{tpu_custom_call.1} parent=5 // pred_check
        %p1503 = pneg %p1502
      $region86: #{tpu_custom_call.1} parent=5 // pred_check_branch
        %1505 = sbr.rel (%p1503) target = $region88
      $region87: #{tpu_custom_call.1} parent=5 // pred_region
        %s1506 = ssub.s32 %s23, 2
        // Predicated region
        $region89: #{tpu_custom_call.1} parent=87 // pred_check
          %p1507 = pneg %p428
        $region90: #{tpu_custom_call.1} parent=87 // pred_check_branch
          %1509 = sbr.rel (%p1507) target = $region92
        $region91: #{tpu_custom_call.1} parent=87 // pred_region
          %s1510 = sand.u32 %s413, 1
          %s1511 = scalar_lea.sflag [#allocation3], %s1510
          %s1512 = sand.u32 %s413, 1
          %s1513 = smul.addr %s1512, 8
          %s1514 = scalar_lea.vmem [#allocation2], %s1513
          %1515 = dma.done %s1511, 128
        $region92: #{tpu_custom_call.1} parent=87 // pred_fallthru
          _
      $region88: #{tpu_custom_call.1} parent=5 // pred_fallthru
        _
    $region6: #{tpu_custom_call.1} parent=1 // loop_footer
      %s27 = sadd.s32 1, %s23
    $region7: #{tpu_custom_call.1} parent=1 // loop_footer_branch
      %22 = sbr.rel target = $region3
    $region8: #{tpu_custom_call.1} parent=1 // loop_exit
      _
    %1516 = vsyncpa [#allocation3], 1
    %s1517 = scalar_lea.sflag [#allocation3], 1
    %1518 = vsyncpa %s1517, 1

</llo_original>
